<compile_context>
chip_gen: v6e
topology: v6e:2x2x1
jax: 0.10.0
libtpu: 0.0.40
codegen_flags: <defaults>
</compile_context>

<pallas_src>
import functools

import jax
import jax.numpy as jnp
from jax.experimental import pallas as pl
from jax.experimental.pallas import tpu as pltpu


_SMEM = pl.BlockSpec(memory_space=pltpu.MemorySpace.SMEM)


# ----------------------------- Pallas kernels ------------------------------

def _conv_prelu_kernel(p_ref, w_ref, alpha_ref, o_ref):
    # im2col conv as one bf16 MXU matmul (f32 accumulate).  BN is folded into
    # the weights (scale on columns, bias via the trailing ones-column of the
    # patches), so the VPU epilogue is just PReLU + cast.
    y = jnp.dot(p_ref[...], w_ref[...], preferred_element_type=jnp.float32)
    y = jnp.where(y > 0.0, y, alpha_ref[...] * y)
    o_ref[...] = y.astype(o_ref.dtype)


def _fc_l1_kernel(flat_ref, w_ref, ps_ref, pt_ref, o_ref, acc_ref, *,
                  batch, inv_count):
    # K-tiled fc: grid axis 0 runs over K blocks ("arbitrary"); a persistent
    # (2B, feat) f32 VMEM scratch accumulates partial products so the fc_w
    # HBM stream double-buffers behind the MXU.  L1 epilogue on the last step.
    k = pl.program_id(0)

    @pl.when(k == 0)
    def _():
        acc_ref[...] = jnp.zeros_like(acc_ref)
        o_ref[0, 0] = jnp.float32(0.0)

    acc_ref[...] += jnp.dot(flat_ref[...], w_ref[...],
                            preferred_element_type=jnp.float32)

    @pl.when(k == pl.num_programs(0) - 1)
    def _():
        feats = acc_ref[...]                                     # (2B, feat) f32
        # fc bias omitted: it cancels exactly in feats_s - feats_t.
        d_feat = jnp.abs(feats[:batch, :] - feats[batch:, :])    # (B, feat)
        d_pose = jnp.abs(ps_ref[...] - pt_ref[...])              # (B, pose)
        # Reduce sublanes (axis 0) first, lanes last.
        feat_row = jnp.sum(d_feat, axis=0, keepdims=True)
        pose_row = jnp.sum(d_pose, axis=0, keepdims=True)
        total = jnp.sum(feat_row) + jnp.sum(pose_row)
        o_ref[0, 0] = total * inv_count


# ------------------------------ kernel wrappers -----------------------------

def _round_up(x, m):
    return ((x + m - 1) // m) * m


def _num_tensorcores():
    """Best-effort TensorCores-per-chip (2 on v7x, 1 on v5e/v6e)."""
    try:
        info = pltpu.get_tpu_info()
        for name in ("num_cores", "num_tensorcores", "tensorcore_count",
                     "cores_per_chip"):
            v = getattr(info, name, None)
            if isinstance(v, int) and v > 0:
                return v
    except Exception:
        pass
    return 1


def _choose_row_tile(rows, n_cores):
    # 1 TC: a single whole-array block at small sizes avoids the ~0.35us/step
    # grid overhead; cap at 4096 rows so blocks never blow past scoped VMEM at
    # real backbone row counts (the old `tile = rows` fallback hazard).
    # >=2 TCs (v7x): >=2 steps per core so "parallel" sharding and DMA/compute
    # double-buffering both engage.
    max_tile = 4096
    if n_cores <= 1:
        return rows if rows <= max_tile else max_tile
    return min(max_tile, max(256, _round_up(max(1, rows // (2 * n_cores)), 8)))


def conv_prelu(patches, w, alpha, *, n_cores):
    rows, kcols = patches.shape
    cout = w.shape[1]
    tile = _choose_row_tile(rows, n_cores)
    rows_pad = _round_up(rows, tile)
    if rows_pad != rows:
        patches = jnp.pad(patches, ((0, rows_pad - rows), (0, 0)))
    grid = (rows_pad // tile,)
    act = pl.pallas_call(
        _conv_prelu_kernel,
        out_shape=jax.ShapeDtypeStruct((rows_pad, cout), jnp.bfloat16),
        grid=grid,
        in_specs=[
            pl.BlockSpec((tile, kcols), lambda i: (i, 0)),
            pl.BlockSpec((kcols, cout), lambda i: (0, 0)),
            pl.BlockSpec((1, cout), lambda i: (0, 0)),
        ],
        out_specs=pl.BlockSpec((tile, cout), lambda i: (i, 0)),
        compiler_params=pltpu.CompilerParams(
            dimension_semantics=("parallel",)),
    )(patches, w, alpha)
    return act[:rows]


def fc_l1(flat, w, z_pose_s, z_pose_t, *, batch, inv_count):
    k_dim, feat = w.shape
    rows2b = flat.shape[0]
    # K-tile the weight stream; at demo size this is 2 cheap steps, at real
    # backbone scale (K = 7*7*512) it is what keeps the fc_w DMA behind the MXU.
    tk = 1024 if (k_dim % 1024 == 0 and k_dim > 1024) else k_dim
    grid = (k_dim // tk,)
    kern = functools.partial(_fc_l1_kernel, batch=batch, inv_count=inv_count)
    out = pl.pallas_call(
        kern,
        out_shape=jax.ShapeDtypeStruct((1, 1), jnp.float32),
        grid=grid,
        in_specs=[
            pl.BlockSpec((rows2b, tk), lambda kk: (0, kk)),
            pl.BlockSpec((tk, feat), lambda kk: (kk, 0)),
            pl.BlockSpec(z_pose_s.shape, lambda kk: (0, 0)),
            pl.BlockSpec(z_pose_t.shape, lambda kk: (0, 0)),
        ],
        out_specs=_SMEM,
        scratch_shapes=[pltpu.VMEM((rows2b, feat), jnp.float32)],
        compiler_params=pltpu.CompilerParams(
            dimension_semantics=("arbitrary",)),
    )(flat, w, z_pose_s, z_pose_t)
    return out[0, 0]


# --------------------------------- glue ------------------------------------

def _im2col_3x3(x_nhwc):
    """'same'-padded 3x3 patch extraction -> (B*H*W, 9*C), channel fastest.

    NOTE: column order is (kh, kw, cin); real checkpoint weights in PyTorch
    (Cout, Cin, KH, KW) layout must be permuted to match before flattening.
    """
    b, h, w, c = x_nhwc.shape
    xp = jnp.pad(x_nhwc, ((0, 0), (1, 1), (1, 1), (0, 0)))
    cols = [xp[:, dh:dh + h, dw:dw + w, :]
            for dh in range(3) for dw in range(3)]
    patches = jnp.concatenate(cols, axis=-1)      # (B, H, W, 9*C)
    return patches.reshape(b * h * w, 9 * c)


def pairwise_headpose_facial_dynamics_loss(params, i_s, i_t,
                                           z_pose_s, z_dyn_t, z_pose_t):
    b, _, h, w = i_s.shape
    pose_dim = z_pose_s.shape[1]
    dyn_dim = z_dyn_t.shape[1]
    feat_dim = params["fc_w"].shape[1]
    cout = params["conv_w"].shape[1]

    # Face features are extracted under torch.no_grad() in the reference;
    # bf16 is used for the MXU matmuls (stop-gradient feature loss).
    imgs = jax.lax.stop_gradient(jnp.concatenate([i_s, i_t], axis=0))  # (2B,...)
    x = jnp.transpose(imgs, (0, 2, 3, 1)).astype(jnp.bfloat16)   # NCHW -> NHWC
    patches = _im2col_3x3(x)                                     # (2B*H*W, 9C)
    # Trailing all-ones column carries the folded BN bias through the matmul.
    ones = jnp.ones((patches.shape[0], 1), jnp.bfloat16)
    patches = jnp.concatenate([patches, ones], axis=-1)          # (rows, 9C+1)

    act = conv_prelu(patches, params["conv_w"], params["prelu_alpha"],
                     n_cores=_num_tensorcores())                 # (rows, cout)

    # Row-major flatten (position-major, channel-minor) matches the fc_w
    # layout; cout/feat_dim are unpadded so no zero-lane HBM amplification.
    flat = act.reshape(2 * b, h * w * cout)

    # |z_dyn_t - z_dyn_t| == 0 adds nothing to the numerator, but its width
    # still counts in the single-mean denominator (matches torch reference).
    inv_count = 1.0 / float(b * (feat_dim + pose_dim + dyn_dim))
    return fc_l1(flat, params["fc_w"],
                 z_pose_s.astype(jnp.float32), z_pose_t.astype(jnp.float32),
                 batch=b, inv_count=inv_count)


# --------------------------- params & reference -----------------------------

def init_params(key, cin=3, cout=8, hw=16, feat_dim=32):
    """Reduced deterministic stand-in embedder (conv3x3 -> BN -> PReLU -> fc).
    Returns (kernel_params, raw_params); BN folded into kernel conv weights."""
    k1, k2, k3, k4 = jax.random.split(key, 4)
    k_real = 9 * cin

    conv_w = 0.1 * jax.random.normal(k1, (k_real, cout), jnp.float32)
    bn_scale = 1.0 + 0.1 * jax.random.normal(k3, (cout,), jnp.float32)
    bn_bias = 0.1 * jax.random.normal(k4, (cout,), jnp.float32)
    prelu_alpha = jnp.full((cout,), 0.25, jnp.float32)
    fc_w = 0.02 * jax.random.normal(k2, (hw * hw * cout, feat_dim), jnp.float32)
    fc_b = jnp.zeros((feat_dim,), jnp.float32)   # cancels in the pairwise diff

    raw = dict(conv_w=conv_w, bn_scale=bn_scale, bn_bias=bn_bias,
               prelu_alpha=prelu_alpha, fc_w=fc_w, fc_b=fc_b)

    # Fold BN:  conv(x)*s + t  ==  [patches | 1] @ [[W*s], [t]]
    conv_w_folded = jnp.concatenate(
        [conv_w * bn_scale[None, :], bn_bias[None, :]], axis=0)   # (9C+1, cout)

    kernel_params = dict(
        conv_w=conv_w_folded.astype(jnp.bfloat16),
        prelu_alpha=prelu_alpha.reshape(1, cout),
        fc_w=fc_w.astype(jnp.bfloat16),
    )
    return kernel_params, raw


def _reference_loss(raw, i_s, i_t, z_pose_s, z_dyn_t, z_pose_t):
    """Pure-jnp f32 mirror of the torch module (with the stand-in embedder)."""
    def backbone(img):
        x = jnp.transpose(img, (0, 2, 3, 1))
        b, h, w, c = x.shape
        xp = jnp.pad(x, ((0, 0), (1, 1), (1, 1), (0, 0)))
        cols = [xp[:, dh:dh + h, dw:dw + w, :]
                for dh in range(3) for dw in range(3)]
        p = jnp.concatenate(cols, axis=-1).reshape(b * h * w, 9 * c)
        y = p @ raw["conv_w"]
        y = y * raw["bn_scale"][None, :] + raw["bn_bias"][None, :]
        y = jnp.where(y > 0, y, raw["prelu_alpha"][None, :] * y)
        return y.reshape(b, -1) @ raw["fc_w"] + raw["fc_b"][None, :]

    f_s, f_t = backbone(i_s), backbone(i_t)
    comb_s = jnp.concatenate([f_s, z_pose_s, z_dyn_t], axis=1)
    comb_t = jnp.concatenate([f_t, z_pose_t, z_dyn_t], axis=1)
    return jnp.mean(jnp.abs(comb_s - comb_t))


if __name__ == "__main__":
    B, C, H, W = 2, 3, 16, 16
    POSE_DIM, DYN_DIM, FEAT_DIM = 8, 16, 32

    key = jax.random.PRNGKey(0)
    kp, k1, k2, k3, k4, k5 = jax.random.split(key, 6)

    params, raw = init_params(kp, cin=C, cout=8, hw=H, feat_dim=FEAT_DIM)

    I_s = jax.random.normal(k1, (B, C, H, W), jnp.float32)
    I_t = jax.random.normal(k2, (B, C, H, W), jnp.float32)
    z_pose_s = jax.random.normal(k3, (B, POSE_DIM), jnp.float32)
    z_dyn_t = jax.random.normal(k4, (B, DYN_DIM), jnp.float32)
    z_pose_t = jax.random.normal(k5, (B, POSE_DIM), jnp.float32)

    loss_fn = jax.jit(pairwise_headpose_facial_dynamics_loss)
    loss = loss_fn(params, I_s, I_t, z_pose_s, z_dyn_t, z_pose_t)
    jax.block_until_ready(loss)

    ref = _reference_loss(raw, I_s, I_t, z_pose_s, z_dyn_t, z_pose_t)
    assert loss.shape == () and bool(jnp.isfinite(loss))
    assert abs(float(loss) - float(ref)) <= 3e-2 * max(1e-3, abs(float(ref))), (
        float(loss), float(ref))
    print("KERNEL_OK")
</pallas_src>

<mosaic_0001>
module attributes {stable_mosaic.version = 11 : i64} {
  func.func @_conv_prelu_kernel(%arg0: i32, %arg1: memref<1024x28xbf16, #tpu.memory_space<vmem>>, %arg2: memref<28x8xbf16, #tpu.memory_space<vmem>>, %arg3: memref<1x8xf32, #tpu.memory_space<vmem>>, %arg4: memref<1024x8xbf16, #tpu.memory_space<vmem>>) attributes {dimension_semantics = [#tpu.dimension_semantics<parallel>], iteration_bounds = array<i64: 1>, scalar_prefetch = 0 : i64, scratch_operands = 0 : i64, tpu.core_type = #tpu.core_type<tc>, window_params = [{transform_indices = @transform_0, window_bounds = array<i64: 1024, 28>}, {pipeline_mode = #tpu.pipeline_mode<synchronous>, transform_indices = @transform_1, window_bounds = array<i64: 28, 8>}, {pipeline_mode = #tpu.pipeline_mode<synchronous>, transform_indices = @transform_2, window_bounds = array<i64: 1, 8>}, {transform_indices = @transform_3, window_bounds = array<i64: 1024, 8>}]} {
    %c0 = arith.constant 0 : index
    %c0_0 = arith.constant 0 : index
    %0 = vector.load %arg1[%c0, %c0_0] : memref<1024x28xbf16, #tpu.memory_space<vmem>>, vector<1024x28xbf16>
    %c0_1 = arith.constant 0 : index
    %c0_2 = arith.constant 0 : index
    %1 = vector.load %arg2[%c0_1, %c0_2] : memref<28x8xbf16, #tpu.memory_space<vmem>>, vector<28x8xbf16>
    %cst = arith.constant dense<0.000000e+00> : vector<1024x8xf32>
    %2 = tpu.matmul %0, %1, %cst {dimension_numbers = #tpu.dot_dimension_numbers<[1], [0], [0], [1], [0, 0, 1, 1], [], []>} : vector<1024x28xbf16>, vector<28x8xbf16>, vector<1024x8xf32> -> vector<1024x8xf32>
    %cst_3 = arith.constant 0.000000e+00 : f32
    %3 = vector.broadcast %cst_3 : f32 to vector<1024x8xf32>
    %4 = arith.cmpf ogt, %2, %3 : vector<1024x8xf32>
    %c0_4 = arith.constant 0 : index
    %c0_5 = arith.constant 0 : index
    %5 = vector.load %arg3[%c0_4, %c0_5] : memref<1x8xf32, #tpu.memory_space<vmem>>, vector<1x8xf32>
    %6 = vector.broadcast %5 : vector<1x8xf32> to vector<1024x8xf32>
    %7 = arith.mulf %6, %2 : vector<1024x8xf32>
    %8 = arith.select %4, %2, %7 : vector<1024x8xi1>, vector<1024x8xf32>
    %9 = arith.truncf %8 : vector<1024x8xf32> to vector<1024x8xbf16>
    %c0_6 = arith.constant 0 : index
    %c0_7 = arith.constant 0 : index
    %10 = vector.load %arg4[%c0_6, %c0_7] : memref<1024x8xbf16, #tpu.memory_space<vmem>>, vector<1024x8xbf16>
    tpu.vector_store %arg4[%c0_6, %c0_7], %9 {strides = array<i32>} : memref<1024x8xbf16, #tpu.memory_space<vmem>>, vector<1024x8xbf16>,
    return
  }
  func.func @transform_0(%arg0: i32) -> (i32, i32) {
    %c0_i32 = arith.constant 0 : i32
    %c0_i32_0 = arith.constant 0 : i32
    return %arg0, %c0_i32 : i32, i32
  }
  func.func @transform_1(%arg0: i32) -> (i32, i32) {
    %c0_i32 = arith.constant 0 : i32
    %c0_i32_0 = arith.constant 0 : i32
    %c0_i32_1 = arith.constant 0 : i32
    return %c0_i32, %c0_i32_0 : i32, i32
  }
  func.func @transform_2(%arg0: i32) -> (i32, i32) {
    %c0_i32 = arith.constant 0 : i32
    %c0_i32_0 = arith.constant 0 : i32
    %c0_i32_1 = arith.constant 0 : i32
    return %c0_i32, %c0_i32_0 : i32, i32
  }
  func.func @transform_3(%arg0: i32) -> (i32, i32) {
    %c0_i32 = arith.constant 0 : i32
    %c0_i32_0 = arith.constant 0 : i32
    return %arg0, %c0_i32 : i32, i32
  }
}

module attributes {stable_mosaic.version = 11 : i64} {
  func.func @_fc_l1_kernel(%arg0: i32, %arg1: memref<4x1024xbf16, #tpu.memory_space<vmem>>, %arg2: memref<1024x32xbf16, #tpu.memory_space<vmem>>, %arg3: memref<2x8xf32, #tpu.memory_space<vmem>>, %arg4: memref<2x8xf32, #tpu.memory_space<vmem>>, %arg5: memref<1x1xf32, #tpu.memory_space<smem>>, %arg6: memref<4x32xf32, #tpu.memory_space<vmem>>) attributes {dimension_semantics = [#tpu.dimension_semantics<arbitrary>], iteration_bounds = array<i64: 2>, scalar_prefetch = 0 : i64, scratch_operands = 1 : i64, tpu.core_type = #tpu.core_type<tc>, window_params = [{transform_indices = @transform_0, window_bounds = array<i64: 4, 1024>}, {transform_indices = @transform_1, window_bounds = array<i64: 1024, 32>}, {pipeline_mode = #tpu.pipeline_mode<synchronous>, transform_indices = @transform_2, window_bounds = array<i64: 2, 8>}, {pipeline_mode = #tpu.pipeline_mode<synchronous>, transform_indices = @transform_3, window_bounds = array<i64: 2, 8>}, {transform_indices = @transform_4, window_bounds = array<i64: 1, 1>}]} {
    %c0_i32 = arith.constant 0 : i32
    %0 = arith.cmpi eq, %arg0, %c0_i32 : i32
    %1 = arith.extui %0 : i1 to i32
    %c0_i32_0 = arith.constant 0 : i32
    %2 = arith.cmpi ne, %1, %c0_i32_0 : i32
    scf.if %2 {
      %cst_9 = arith.constant 0.000000e+00 : f32
      %12 = vector.broadcast %cst_9 : f32 to vector<4x32xf32>
      %c0_10 = arith.constant 0 : index
      %c0_11 = arith.constant 0 : index
      %13 = vector.load %arg6[%c0_10, %c0_11] : memref<4x32xf32, #tpu.memory_space<vmem>>, vector<4x32xf32>
      tpu.vector_store %arg6[%c0_10, %c0_11], %12 {strides = array<i32>} : memref<4x32xf32, #tpu.memory_space<vmem>>, vector<4x32xf32>,
      %cst_12 = arith.constant 0.000000e+00 : f32
      %c0_13 = arith.constant 0 : index
      %c0_14 = arith.constant 0 : index
      %14 = memref.load %arg5[%c0_13, %c0_14] : memref<1x1xf32, #tpu.memory_space<smem>>
      memref.store %cst_12, %arg5[%c0_13, %c0_14] : memref<1x1xf32, #tpu.memory_space<smem>>
    } else {
    }
    %c0 = arith.constant 0 : index
    %c0_1 = arith.constant 0 : index
    %3 = vector.load %arg6[%c0, %c0_1] : memref<4x32xf32, #tpu.memory_space<vmem>>, vector<4x32xf32>
    %c0_2 = arith.constant 0 : index
    %c0_3 = arith.constant 0 : index
    %4 = vector.load %arg1[%c0_2, %c0_3] : memref<4x1024xbf16, #tpu.memory_space<vmem>>, vector<4x1024xbf16>
    %c0_4 = arith.constant 0 : index
    %c0_5 = arith.constant 0 : index
    %5 = vector.load %arg2[%c0_4, %c0_5] : memref<1024x32xbf16, #tpu.memory_space<vmem>>, vector<1024x32xbf16>
    %cst = arith.constant dense<0.000000e+00> : vector<4x32xf32>
    %6 = tpu.matmul %4, %5, %cst {dimension_numbers = #tpu.dot_dimension_numbers<[1], [0], [0], [1], [0, 0, 1, 1], [], []>} : vector<4x1024xbf16>, vector<1024x32xbf16>, vector<4x32xf32> -> vector<4x32xf32>
    %7 = arith.addf %3, %6 : vector<4x32xf32>
    %c0_6 = arith.constant 0 : index
    %c0_7 = arith.constant 0 : index
    %8 = vector.load %arg6[%c0_6, %c0_7] : memref<4x32xf32, #tpu.memory_space<vmem>>, vector<4x32xf32>
    tpu.vector_store %arg6[%c0_6, %c0_7], %7 {strides = array<i32>} : memref<4x32xf32, #tpu.memory_space<vmem>>, vector<4x32xf32>,
    %c1_i32 = arith.constant 1 : i32
    %9 = arith.cmpi eq, %arg0, %c1_i32 : i32
    %10 = arith.extui %9 : i1 to i32
    %c0_i32_8 = arith.constant 0 : i32
    %11 = arith.cmpi ne, %10, %c0_i32_8 : i32
    scf.if %11 {
      %c0_9 = arith.constant 0 : index
      %c0_10 = arith.constant 0 : index
      %12 = vector.load %arg6[%c0_9, %c0_10] : memref<4x32xf32, #tpu.memory_space<vmem>>, vector<4x32xf32>
      %13 = vector.extract_strided_slice %12 {offsets = [0, 0], sizes = [2, 32], strides = [1, 1]} : vector<4x32xf32> to vector<2x32xf32>
      %14 = vector.extract_strided_slice %12 {offsets = [2, 0], sizes = [2, 32], strides = [1, 1]} : vector<4x32xf32> to vector<2x32xf32>
      %15 = arith.subf %13, %14 : vector<2x32xf32>
      %16 = math.absf %15 : vector<2x32xf32>
      %c0_11 = arith.constant 0 : index
      %c0_12 = arith.constant 0 : index
      %17 = vector.load %arg3[%c0_11, %c0_12] : memref<2x8xf32, #tpu.memory_space<vmem>>, vector<2x8xf32>
      %c0_13 = arith.constant 0 : index
      %c0_14 = arith.constant 0 : index
      %18 = vector.load %arg4[%c0_13, %c0_14] : memref<2x8xf32, #tpu.memory_space<vmem>>, vector<2x8xf32>
      %19 = arith.subf %17, %18 : vector<2x8xf32>
      %20 = math.absf %19 : vector<2x8xf32>
      %cst_15 = arith.constant dense<0.000000e+00> : vector<32xf32>
      %21 = vector.multi_reduction <add>, %16, %cst_15 [0] : vector<2x32xf32> to vector<32xf32>
      %22 = vector.shape_cast %21 : vector<32xf32> to vector<1x32xf32>
      %cst_16 = arith.constant dense<0.000000e+00> : vector<8xf32>
      %23 = vector.multi_reduction <add>, %20, %cst_16 [0] : vector<2x8xf32> to vector<8xf32>
      %24 = vector.shape_cast %23 : vector<8xf32> to vector<1x8xf32>
      %25 = vector.shape_cast %22 : vector<1x32xf32> to vector<1x1x32xf32>
      %cst_17 = arith.constant dense<0.000000e+00> : vector<1xf32>
      %26 = vector.multi_reduction <add>, %25, %cst_17 [1, 2] : vector<1x1x32xf32> to vector<1xf32>
      %27 = vector.shape_cast %26 : vector<1xf32> to vector<1x1x1xf32>
      %28 = vector.extract %27[0, 0, 0] : f32 from vector<1x1x1xf32>
      %29 = vector.shape_cast %24 : vector<1x8xf32> to vector<1x1x8xf32>
      %cst_18 = arith.constant dense<0.000000e+00> : vector<1xf32>
      %30 = vector.multi_reduction <add>, %29, %cst_18 [1, 2] : vector<1x1x8xf32> to vector<1xf32>
      %31 = vector.shape_cast %30 : vector<1xf32> to vector<1x1x1xf32>
      %32 = vector.extract %31[0, 0, 0] : f32 from vector<1x1x1xf32>
      %33 = arith.addf %28, %32 : f32
      %cst_19 = arith.constant 0.00892857183 : f32
      %34 = arith.mulf %33, %cst_19 : f32
      %c0_20 = arith.constant 0 : index
      %c0_21 = arith.constant 0 : index
      %35 = memref.load %arg5[%c0_20, %c0_21] : memref<1x1xf32, #tpu.memory_space<smem>>
      memref.store %34, %arg5[%c0_20, %c0_21] : memref<1x1xf32, #tpu.memory_space<smem>>
    } else {
    }
    return
  }
  func.func @transform_0(%arg0: i32) -> (i32, i32) {
    %c0_i32 = arith.constant 0 : i32
    %c0_i32_0 = arith.constant 0 : i32
    return %c0_i32, %arg0 : i32, i32
  }
  func.func @transform_1(%arg0: i32) -> (i32, i32) {
    %c0_i32 = arith.constant 0 : i32
    %c0_i32_0 = arith.constant 0 : i32
    return %arg0, %c0_i32 : i32, i32
  }
  func.func @transform_2(%arg0: i32) -> (i32, i32) {
    %c0_i32 = arith.constant 0 : i32
    %c0_i32_0 = arith.constant 0 : i32
    %c0_i32_1 = arith.constant 0 : i32
    return %c0_i32, %c0_i32_0 : i32, i32
  }
  func.func @transform_3(%arg0: i32) -> (i32, i32) {
    %c0_i32 = arith.constant 0 : i32
    %c0_i32_0 = arith.constant 0 : i32
    %c0_i32_1 = arith.constant 0 : i32
    return %c0_i32, %c0_i32_0 : i32, i32
  }
  func.func @transform_4(%arg0: i32) -> (i32, i32) {
    %c0_i32 = arith.constant 0 : i32
    %c0_i32_0 = arith.constant 0 : i32
    %c0_i32_1 = arith.constant 0 : i32
    return %c0_i32, %c0_i32_0 : i32, i32
  }
}

</mosaic_0001>

<llo_original>
// kernel: pairwise_headpose_facial_dynamics_loss.2
$region0: #{pairwise_headpose_facial_dynamics_loss.2}
  #allocation0 [shape = 'u32[]', space=smem, size = 0x4, offset = 0x4, fixed_abs, tag = 'smem constant byte address 0x4 - core index']
  #allocation1 [shape = 'u32[144,128]{1,0:T(1,128)}', space=vmem, size = 0x12000, scoped, tag = 'internal scratch']
  %s0 = inlined_call_operand.vmem [shape: bf16[1024,28], index: 0, kind: input, shape index: {}]
  %s1 = inlined_call_operand.vmem [shape: bf16[28,8], index: 1, kind: input, shape index: {}]
  %s2 = inlined_call_operand.vmem [shape: f32[1,8], index: 2, kind: input, shape index: {}]
  %s3 = inlined_call_operand.vmem [shape: bf16[1024,8], index: 3, kind: output, shape index: {}]
  %s4 = sld [smem:[#allocation0]]
  $region22: #{pairwise_headpose_facial_dynamics_loss.2} parent=0
    _
  %s6 = ssub.s32 1, %s4
  %s7 = scalar_select 0, %s6, %s4
  // Predicated region
  $region2: #{pairwise_headpose_facial_dynamics_loss.2} parent=0 // pred_check
    _
  $region3: #{pairwise_headpose_facial_dynamics_loss.2} parent=0 // pred_check_branch
    %9 = sbr.rel (0) target = $region5
  $region4: #{pairwise_headpose_facial_dynamics_loss.2} parent=0 // pred_region
    _
  $region5: #{pairwise_headpose_facial_dynamics_loss.2} parent=0 // pred_fallthru
    _
  // Predicated region
  $region6: #{pairwise_headpose_facial_dynamics_loss.2} parent=0 // pred_check
    _
  $region7: #{pairwise_headpose_facial_dynamics_loss.2} parent=0 // pred_check_branch
    %11 = sbr.rel (0) target = $region9
  $region8: #{pairwise_headpose_facial_dynamics_loss.2} parent=0 // pred_region
    _
  $region9: #{pairwise_headpose_facial_dynamics_loss.2} parent=0 // pred_fallthru
    _
  // Predicated region
  $region10: #{pairwise_headpose_facial_dynamics_loss.2} parent=0 // pred_check
    _
  $region11: #{pairwise_headpose_facial_dynamics_loss.2} parent=0 // pred_check_branch
    %13 = sbr.rel (0) target = $region13
  $region12: #{pairwise_headpose_facial_dynamics_loss.2} parent=0 // pred_region
    _
  $region13: #{pairwise_headpose_facial_dynamics_loss.2} parent=0 // pred_fallthru
    _
  %v15 = vld [vmem:[%s0] sm:$0xf]
  %v16 = vld [vmem:[%s0 + $0x4] sm:$0xf]
  %v17 = vld [vmem:[%s0 + $0x8] sm:$0xf]
  %v18 = vld [vmem:[%s0 + $0xc] sm:$0xf]
  %v19 = vld [vmem:[%s0 + $0x10] sm:$0xf]
  %v20 = vld [vmem:[%s0 + $0x14] sm:$0xf]
  %v21 = vld [vmem:[%s0 + $0x18] sm:$0xf]
  %v22 = vld [vmem:[%s0 + $0x1c] sm:$0xf]
  %v23 = vld [vmem:[%s0 + $0x20] sm:$0xf]
  %v24 = vld [vmem:[%s0 + $0x24] sm:$0xf]
  %v25 = vld [vmem:[%s0 + $0x28] sm:$0xf]
  %v26 = vld [vmem:[%s0 + $0x2c] sm:$0xf]
  %v27 = vld [vmem:[%s0 + $0x30] sm:$0xf]
  %v28 = vld [vmem:[%s0 + $0x34] sm:$0xf]
  %v29 = vld [vmem:[%s0 + $0x38] sm:$0xf]
  %v30 = vld [vmem:[%s0 + $0x3c] sm:$0xf]
  %v31 = vld [vmem:[%s0 + $0x40] sm:$0xf]
  %v32 = vld [vmem:[%s0 + $0x44] sm:$0xf]
  %v33 = vld [vmem:[%s0 + $0x48] sm:$0xf]
  %v34 = vld [vmem:[%s0 + $0x4c] sm:$0xf]
  %v35 = vld [vmem:[%s0 + $0x50] sm:$0xf]
  %v36 = vld [vmem:[%s0 + $0x54] sm:$0xf]
  %v37 = vld [vmem:[%s0 + $0x58] sm:$0xf]
  %v38 = vld [vmem:[%s0 + $0x5c] sm:$0xf]
  %v39 = vld [vmem:[%s0 + $0x60] sm:$0xf]
  %v40 = vld [vmem:[%s0 + $0x64] sm:$0xf]
  %v41 = vld [vmem:[%s0 + $0x68] sm:$0xf]
  %v42 = vld [vmem:[%s0 + $0x6c] sm:$0xf]
  %v43 = vld [vmem:[%s0 + $0x70] sm:$0xf]
  %v44 = vld [vmem:[%s0 + $0x74] sm:$0xf]
  %v45 = vld [vmem:[%s0 + $0x78] sm:$0xf]
  %v46 = vld [vmem:[%s0 + $0x7c] sm:$0xf]
  %v47 = vld [vmem:[%s0 + $0x80] sm:$0xf]
  %v48 = vld [vmem:[%s0 + $0x84] sm:$0xf]
  %v49 = vld [vmem:[%s0 + $0x88] sm:$0xf]
  %v50 = vld [vmem:[%s0 + $0x8c] sm:$0xf]
  %v51 = vld [vmem:[%s0 + $0x90] sm:$0xf]
  %v52 = vld [vmem:[%s0 + $0x94] sm:$0xf]
  %v53 = vld [vmem:[%s0 + $0x98] sm:$0xf]
  %v54 = vld [vmem:[%s0 + $0x9c] sm:$0xf]
  %v55 = vld [vmem:[%s0 + $0xa0] sm:$0xf]
  %v56 = vld [vmem:[%s0 + $0xa4] sm:$0xf]
  %v57 = vld [vmem:[%s0 + $0xa8] sm:$0xf]
  %v58 = vld [vmem:[%s0 + $0xac] sm:$0xf]
  %v59 = vld [vmem:[%s0 + $0xb0] sm:$0xf]
  %v60 = vld [vmem:[%s0 + $0xb4] sm:$0xf]
  %v61 = vld [vmem:[%s0 + $0xb8] sm:$0xf]
  %v62 = vld [vmem:[%s0 + $0xbc] sm:$0xf]
  %v63 = vld [vmem:[%s0 + $0xc0] sm:$0xf]
  %v64 = vld [vmem:[%s0 + $0xc4] sm:$0xf]
  %v65 = vld [vmem:[%s0 + $0xc8] sm:$0xf]
  %v66 = vld [vmem:[%s0 + $0xcc] sm:$0xf]
  %v67 = vld [vmem:[%s0 + $0xd0] sm:$0xf]
  %v68 = vld [vmem:[%s0 + $0xd4] sm:$0xf]
  %v69 = vld [vmem:[%s0 + $0xd8] sm:$0xf]
  %v70 = vld [vmem:[%s0 + $0xdc] sm:$0xf]
  %v71 = vld [vmem:[%s0 + $0xe0] sm:$0xf]
  %v72 = vld [vmem:[%s0 + $0xe4] sm:$0xf]
  %v73 = vld [vmem:[%s0 + $0xe8] sm:$0xf]
  %v74 = vld [vmem:[%s0 + $0xec] sm:$0xf]
  %v75 = vld [vmem:[%s0 + $0xf0] sm:$0xf]
  %v76 = vld [vmem:[%s0 + $0xf4] sm:$0xf]
  %v77 = vld [vmem:[%s0 + $0xf8] sm:$0xf]
  %v78 = vld [vmem:[%s0 + $0xfc] sm:$0xf]
  %v79 = vld [vmem:[%s0 + $0x100] sm:$0xf]
  %v80 = vld [vmem:[%s0 + $0x104] sm:$0xf]
  %v81 = vld [vmem:[%s0 + $0x108] sm:$0xf]
  %v82 = vld [vmem:[%s0 + $0x10c] sm:$0xf]
  %v83 = vld [vmem:[%s0 + $0x110] sm:$0xf]
  %v84 = vld [vmem:[%s0 + $0x114] sm:$0xf]
  %v85 = vld [vmem:[%s0 + $0x118] sm:$0xf]
  %v86 = vld [vmem:[%s0 + $0x11c] sm:$0xf]
  %v87 = vld [vmem:[%s0 + $0x120] sm:$0xf]
  %v88 = vld [vmem:[%s0 + $0x124] sm:$0xf]
  %v89 = vld [vmem:[%s0 + $0x128] sm:$0xf]
  %v90 = vld [vmem:[%s0 + $0x12c] sm:$0xf]
  %v91 = vld [vmem:[%s0 + $0x130] sm:$0xf]
  %v92 = vld [vmem:[%s0 + $0x134] sm:$0xf]
  %v93 = vld [vmem:[%s0 + $0x138] sm:$0xf]
  %v94 = vld [vmem:[%s0 + $0x13c] sm:$0xf]
  %v95 = vld [vmem:[%s0 + $0x140] sm:$0xf]
  %v96 = vld [vmem:[%s0 + $0x144] sm:$0xf]
  %v97 = vld [vmem:[%s0 + $0x148] sm:$0xf]
  %v98 = vld [vmem:[%s0 + $0x14c] sm:$0xf]
  %v99 = vld [vmem:[%s0 + $0x150] sm:$0xf]
  %v100 = vld [vmem:[%s0 + $0x154] sm:$0xf]
  %v101 = vld [vmem:[%s0 + $0x158] sm:$0xf]
  %v102 = vld [vmem:[%s0 + $0x15c] sm:$0xf]
  %v103 = vld [vmem:[%s0 + $0x160] sm:$0xf]
  %v104 = vld [vmem:[%s0 + $0x164] sm:$0xf]
  %v105 = vld [vmem:[%s0 + $0x168] sm:$0xf]
  %v106 = vld [vmem:[%s0 + $0x16c] sm:$0xf]
  %v107 = vld [vmem:[%s0 + $0x170] sm:$0xf]
  %v108 = vld [vmem:[%s0 + $0x174] sm:$0xf]
  %v109 = vld [vmem:[%s0 + $0x178] sm:$0xf]
  %v110 = vld [vmem:[%s0 + $0x17c] sm:$0xf]
  %v111 = vld [vmem:[%s0 + $0x180] sm:$0xf]
  %v112 = vld [vmem:[%s0 + $0x184] sm:$0xf]
  %v113 = vld [vmem:[%s0 + $0x188] sm:$0xf]
  %v114 = vld [vmem:[%s0 + $0x18c] sm:$0xf]
  %v115 = vld [vmem:[%s0 + $0x190] sm:$0xf]
  %v116 = vld [vmem:[%s0 + $0x194] sm:$0xf]
  %v117 = vld [vmem:[%s0 + $0x198] sm:$0xf]
  %v118 = vld [vmem:[%s0 + $0x19c] sm:$0xf]
  %v119 = vld [vmem:[%s0 + $0x1a0] sm:$0xf]
  %v120 = vld [vmem:[%s0 + $0x1a4] sm:$0xf]
  %v121 = vld [vmem:[%s0 + $0x1a8] sm:$0xf]
  %v122 = vld [vmem:[%s0 + $0x1ac] sm:$0xf]
  %v123 = vld [vmem:[%s0 + $0x1b0] sm:$0xf]
  %v124 = vld [vmem:[%s0 + $0x1b4] sm:$0xf]
  %v125 = vld [vmem:[%s0 + $0x1b8] sm:$0xf]
  %v126 = vld [vmem:[%s0 + $0x1bc] sm:$0xf]
  %v127 = vld [vmem:[%s0 + $0x1c0] sm:$0xf]
  %v128 = vld [vmem:[%s0 + $0x1c4] sm:$0xf]
  %v129 = vld [vmem:[%s0 + $0x1c8] sm:$0xf]
  %v130 = vld [vmem:[%s0 + $0x1cc] sm:$0xf]
  %v131 = vld [vmem:[%s0 + $0x1d0] sm:$0xf]
  %v132 = vld [vmem:[%s0 + $0x1d4] sm:$0xf]
  %v133 = vld [vmem:[%s0 + $0x1d8] sm:$0xf]
  %v134 = vld [vmem:[%s0 + $0x1dc] sm:$0xf]
  %v135 = vld [vmem:[%s0 + $0x1e0] sm:$0xf]
  %v136 = vld [vmem:[%s0 + $0x1e4] sm:$0xf]
  %v137 = vld [vmem:[%s0 + $0x1e8] sm:$0xf]
  %v138 = vld [vmem:[%s0 + $0x1ec] sm:$0xf]
  %v139 = vld [vmem:[%s0 + $0x1f0] sm:$0xf]
  %v140 = vld [vmem:[%s0 + $0x1f4] sm:$0xf]
  %v141 = vld [vmem:[%s0 + $0x1f8] sm:$0xf]
  %v142 = vld [vmem:[%s0 + $0x1fc] sm:$0xf]
  %v143 = vld [vmem:[%s1] sm:$0xf]
  %v144 = vld [vmem:[%s1 + $0x4] sm:$0xf]
  %v145 = vld [vmem:[%s1 + $0x8] sm:$0xf]
  %v146 = vld [vmem:[%s1 + $0xc] sm:$0x3]
  %v275 = vunpack.c.l.b16 %v15
  %v276 = vunpack.c.l.b16 %v16
  %v277 = vunpack.c.l.b16 %v17
  %v278 = vunpack.c.l.b16 %v18
  %v279 = vunpack.c.l.b16 %v19
  %v280 = vunpack.c.l.b16 %v20
  %v281 = vunpack.c.l.b16 %v21
  %v282 = vunpack.c.l.b16 %v22
  %v283 = vunpack.c.l.b16 %v23
  %v284 = vunpack.c.l.b16 %v24
  %v285 = vunpack.c.l.b16 %v25
  %v286 = vunpack.c.l.b16 %v26
  %v287 = vunpack.c.l.b16 %v27
  %v288 = vunpack.c.l.b16 %v28
  %v289 = vunpack.c.l.b16 %v29
  %v290 = vunpack.c.l.b16 %v30
  %v291 = vunpack.c.l.b16 %v31
  %v292 = vunpack.c.l.b16 %v32
  %v293 = vunpack.c.l.b16 %v33
  %v294 = vunpack.c.l.b16 %v34
  %v295 = vunpack.c.l.b16 %v35
  %v296 = vunpack.c.l.b16 %v36
  %v297 = vunpack.c.l.b16 %v37
  %v298 = vunpack.c.l.b16 %v38
  %v299 = vunpack.c.l.b16 %v39
  %v300 = vunpack.c.l.b16 %v40
  %v301 = vunpack.c.l.b16 %v41
  %v302 = vunpack.c.l.b16 %v42
  %v303 = vunpack.c.l.b16 %v43
  %v304 = vunpack.c.l.b16 %v44
  %v305 = vunpack.c.l.b16 %v45
  %v306 = vunpack.c.l.b16 %v46
  %v307 = vunpack.c.l.b16 %v47
  %v308 = vunpack.c.l.b16 %v48
  %v309 = vunpack.c.l.b16 %v49
  %v310 = vunpack.c.l.b16 %v50
  %v311 = vunpack.c.l.b16 %v51
  %v312 = vunpack.c.l.b16 %v52
  %v313 = vunpack.c.l.b16 %v53
  %v314 = vunpack.c.l.b16 %v54
  %v315 = vunpack.c.l.b16 %v55
  %v316 = vunpack.c.l.b16 %v56
  %v317 = vunpack.c.l.b16 %v57
  %v318 = vunpack.c.l.b16 %v58
  %v319 = vunpack.c.l.b16 %v59
  %v320 = vunpack.c.l.b16 %v60
  %v321 = vunpack.c.l.b16 %v61
  %v322 = vunpack.c.l.b16 %v62
  %v323 = vunpack.c.l.b16 %v63
  %v324 = vunpack.c.l.b16 %v64
  %v325 = vunpack.c.l.b16 %v65
  %v326 = vunpack.c.l.b16 %v66
  %v327 = vunpack.c.l.b16 %v67
  %v328 = vunpack.c.l.b16 %v68
  %v329 = vunpack.c.l.b16 %v69
  %v330 = vunpack.c.l.b16 %v70
  %v331 = vunpack.c.l.b16 %v71
  %v332 = vunpack.c.l.b16 %v72
  %v333 = vunpack.c.l.b16 %v73
  %v334 = vunpack.c.l.b16 %v74
  %v335 = vunpack.c.l.b16 %v75
  %v336 = vunpack.c.l.b16 %v76
  %v337 = vunpack.c.l.b16 %v77
  %v338 = vunpack.c.l.b16 %v78
  %v339 = vunpack.c.l.b16 %v79
  %v340 = vunpack.c.l.b16 %v80
  %v341 = vunpack.c.l.b16 %v81
  %v342 = vunpack.c.l.b16 %v82
  %v343 = vunpack.c.l.b16 %v83
  %v344 = vunpack.c.l.b16 %v84
  %v345 = vunpack.c.l.b16 %v85
  %v346 = vunpack.c.l.b16 %v86
  %v347 = vunpack.c.l.b16 %v87
  %v348 = vunpack.c.l.b16 %v88
  %v349 = vunpack.c.l.b16 %v89
  %v350 = vunpack.c.l.b16 %v90
  %v351 = vunpack.c.l.b16 %v91
  %v352 = vunpack.c.l.b16 %v92
  %v353 = vunpack.c.l.b16 %v93
  %v354 = vunpack.c.l.b16 %v94
  %v355 = vunpack.c.l.b16 %v95
  %v356 = vunpack.c.l.b16 %v96
  %v357 = vunpack.c.l.b16 %v97
  %v358 = vunpack.c.l.b16 %v98
  %v359 = vunpack.c.l.b16 %v99
  %v360 = vunpack.c.l.b16 %v100
  %v361 = vunpack.c.l.b16 %v101
  %v362 = vunpack.c.l.b16 %v102
  %v363 = vunpack.c.l.b16 %v103
  %v364 = vunpack.c.l.b16 %v104
  %v365 = vunpack.c.l.b16 %v105
  %v366 = vunpack.c.l.b16 %v106
  %v367 = vunpack.c.l.b16 %v107
  %v368 = vunpack.c.l.b16 %v108
  %v369 = vunpack.c.l.b16 %v109
  %v370 = vunpack.c.l.b16 %v110
  %v371 = vunpack.c.l.b16 %v111
  %v372 = vunpack.c.l.b16 %v112
  %v373 = vunpack.c.l.b16 %v113
  %v374 = vunpack.c.l.b16 %v114
  %v375 = vunpack.c.l.b16 %v115
  %v376 = vunpack.c.l.b16 %v116
  %v377 = vunpack.c.l.b16 %v117
  %v378 = vunpack.c.l.b16 %v118
  %v379 = vunpack.c.l.b16 %v119
  %v380 = vunpack.c.l.b16 %v120
  %v381 = vunpack.c.l.b16 %v121
  %v382 = vunpack.c.l.b16 %v122
  %v383 = vunpack.c.l.b16 %v123
  %v384 = vunpack.c.l.b16 %v124
  %v385 = vunpack.c.l.b16 %v125
  %v386 = vunpack.c.l.b16 %v126
  %v387 = vunpack.c.l.b16 %v127
  %v388 = vunpack.c.l.b16 %v128
  %v389 = vunpack.c.l.b16 %v129
  %v390 = vunpack.c.l.b16 %v130
  %v391 = vunpack.c.l.b16 %v131
  %v392 = vunpack.c.l.b16 %v132
  %v393 = vunpack.c.l.b16 %v133
  %v394 = vunpack.c.l.b16 %v134
  %v395 = vunpack.c.l.b16 %v135
  %v396 = vunpack.c.l.b16 %v136
  %v397 = vunpack.c.l.b16 %v137
  %v398 = vunpack.c.l.b16 %v138
  %v399 = vunpack.c.l.b16 %v139
  %v400 = vunpack.c.l.b16 %v140
  %v401 = vunpack.c.l.b16 %v141
  %v402 = vunpack.c.l.b16 %v142
  %v403 = vpack.c.b16 %v276, %v275
  %v404 = vpack.c.b16 %v278, %v277
  %v405 = vpack.c.b16 %v280, %v279
  %v406 = vpack.c.b16 %v282, %v281
  %v407 = vpack.c.b16 %v284, %v283
  %v408 = vpack.c.b16 %v286, %v285
  %v409 = vpack.c.b16 %v288, %v287
  %v410 = vpack.c.b16 %v290, %v289
  %v411 = vpack.c.b16 %v292, %v291
  %v412 = vpack.c.b16 %v294, %v293
  %v413 = vpack.c.b16 %v296, %v295
  %v414 = vpack.c.b16 %v298, %v297
  %v415 = vpack.c.b16 %v300, %v299
  %v416 = vpack.c.b16 %v302, %v301
  %v417 = vpack.c.b16 %v304, %v303
  %v418 = vpack.c.b16 %v306, %v305
  %v419 = vpack.c.b16 %v308, %v307
  %v420 = vpack.c.b16 %v310, %v309
  %v421 = vpack.c.b16 %v312, %v311
  %v422 = vpack.c.b16 %v314, %v313
  %v423 = vpack.c.b16 %v316, %v315
  %v424 = vpack.c.b16 %v318, %v317
  %v425 = vpack.c.b16 %v320, %v319
  %v426 = vpack.c.b16 %v322, %v321
  %v427 = vpack.c.b16 %v324, %v323
  %v428 = vpack.c.b16 %v326, %v325
  %v429 = vpack.c.b16 %v328, %v327
  %v430 = vpack.c.b16 %v330, %v329
  %v431 = vpack.c.b16 %v332, %v331
  %v432 = vpack.c.b16 %v334, %v333
  %v433 = vpack.c.b16 %v336, %v335
  %v434 = vpack.c.b16 %v338, %v337
  %v435 = vpack.c.b16 %v340, %v339
  %v436 = vpack.c.b16 %v342, %v341
  %v437 = vpack.c.b16 %v344, %v343
  %v438 = vpack.c.b16 %v346, %v345
  %v439 = vpack.c.b16 %v348, %v347
  %v440 = vpack.c.b16 %v350, %v349
  %v441 = vpack.c.b16 %v352, %v351
  %v442 = vpack.c.b16 %v354, %v353
  %v443 = vpack.c.b16 %v356, %v355
  %v444 = vpack.c.b16 %v358, %v357
  %v445 = vpack.c.b16 %v360, %v359
  %v446 = vpack.c.b16 %v362, %v361
  %v447 = vpack.c.b16 %v364, %v363
  %v448 = vpack.c.b16 %v366, %v365
  %v449 = vpack.c.b16 %v368, %v367
  %v450 = vpack.c.b16 %v370, %v369
  %v451 = vpack.c.b16 %v372, %v371
  %v452 = vpack.c.b16 %v374, %v373
  %v453 = vpack.c.b16 %v376, %v375
  %v454 = vpack.c.b16 %v378, %v377
  %v455 = vpack.c.b16 %v380, %v379
  %v456 = vpack.c.b16 %v382, %v381
  %v457 = vpack.c.b16 %v384, %v383
  %v458 = vpack.c.b16 %v386, %v385
  %v459 = vpack.c.b16 %v388, %v387
  %v460 = vpack.c.b16 %v390, %v389
  %v461 = vpack.c.b16 %v392, %v391
  %v462 = vpack.c.b16 %v394, %v393
  %v463 = vpack.c.b16 %v396, %v395
  %v464 = vpack.c.b16 %v398, %v397
  %v465 = vpack.c.b16 %v400, %v399
  %v466 = vpack.c.b16 %v402, %v401
  %v471 = vunpack.c.l.b16 %v143
  %v472 = vunpack.c.l.b16 %v144
  %v473 = vunpack.c.l.b16 %v145
  %v474 = vunpack.c.l.b16 %v146
  %v475 = vpack.c.b16 %v472, %v471
  %v476 = vpack.c.b16 %v474, %v473
  %vm478 = vcmask 228352
  %v480 = vsel %vm478, %v403, 0
  %v483 = vsel %vm478, %v404, 0
  %v486 = vsel %vm478, %v405, 0
  %v489 = vsel %vm478, %v406, 0
  %v492 = vsel %vm478, %v407, 0
  %v495 = vsel %vm478, %v408, 0
  %v498 = vsel %vm478, %v409, 0
  %v501 = vsel %vm478, %v410, 0
  %v504 = vsel %vm478, %v411, 0
  %v507 = vsel %vm478, %v412, 0
  %v510 = vsel %vm478, %v413, 0
  %v513 = vsel %vm478, %v414, 0
  %v516 = vsel %vm478, %v415, 0
  %v519 = vsel %vm478, %v416, 0
  %v522 = vsel %vm478, %v417, 0
  %v525 = vsel %vm478, %v418, 0
  %v528 = vsel %vm478, %v419, 0
  %v531 = vsel %vm478, %v420, 0
  %v534 = vsel %vm478, %v421, 0
  %v537 = vsel %vm478, %v422, 0
  %v540 = vsel %vm478, %v423, 0
  %v543 = vsel %vm478, %v424, 0
  %v546 = vsel %vm478, %v425, 0
  %v549 = vsel %vm478, %v426, 0
  %v552 = vsel %vm478, %v427, 0
  %v555 = vsel %vm478, %v428, 0
  %v558 = vsel %vm478, %v429, 0
  %v561 = vsel %vm478, %v430, 0
  %v564 = vsel %vm478, %v431, 0
  %v567 = vsel %vm478, %v432, 0
  %v570 = vsel %vm478, %v433, 0
  %v573 = vsel %vm478, %v434, 0
  %v576 = vsel %vm478, %v435, 0
  %v579 = vsel %vm478, %v436, 0
  %v582 = vsel %vm478, %v437, 0
  %v585 = vsel %vm478, %v438, 0
  %v588 = vsel %vm478, %v439, 0
  %v591 = vsel %vm478, %v440, 0
  %v594 = vsel %vm478, %v441, 0
  %v597 = vsel %vm478, %v442, 0
  %v600 = vsel %vm478, %v443, 0
  %v603 = vsel %vm478, %v444, 0
  %v606 = vsel %vm478, %v445, 0
  %v609 = vsel %vm478, %v446, 0
  %v612 = vsel %vm478, %v447, 0
  %v615 = vsel %vm478, %v448, 0
  %v618 = vsel %vm478, %v449, 0
  %v621 = vsel %vm478, %v450, 0
  %v624 = vsel %vm478, %v451, 0
  %v627 = vsel %vm478, %v452, 0
  %v630 = vsel %vm478, %v453, 0
  %v633 = vsel %vm478, %v454, 0
  %v636 = vsel %vm478, %v455, 0
  %v639 = vsel %vm478, %v456, 0
  %v642 = vsel %vm478, %v457, 0
  %v645 = vsel %vm478, %v458, 0
  %v648 = vsel %vm478, %v459, 0
  %v651 = vsel %vm478, %v460, 0
  %v654 = vsel %vm478, %v461, 0
  %v657 = vsel %vm478, %v462, 0
  %v660 = vsel %vm478, %v463, 0
  %v663 = vsel %vm478, %v464, 0
  %v666 = vsel %vm478, %v465, 0
  %v669 = vsel %vm478, %v466, 0
  %vm671 = vcmask 1045504
  %v673 = vsel %vm671, %v476, 0
  %675 = vmatprep.subr.bf16.mxu0 0
  %676 = vmatpush1.bf16.msra.mxu0 0
  %677 = vmatprep.subr.bf16.mxu0 0
  %678 = vmatpush1.bf16.msra.mxu0 0
  %679 = vmatprep.subr.bf16.mxu0 0
  %680 = vmatpush1.bf16.msra.mxu0 0
  %681 = vmatprep.subr.bf16.mxu0 0
  %682 = vmatpush1.bf16.msra.mxu0 0
  %683 = vmatprep.subr.bf16.mxu0 0
  %684 = vmatpush1.bf16.msra.mxu0 0
  %685 = vmatprep.subr.bf16.mxu0 0
  %686 = vmatpush1.bf16.msra.mxu0 0
  %687 = vmatprep.subr.bf16.mxu0 0
  %688 = vmatpush1.bf16.msra.mxu0 %v673
  %689 = vmatprep.subr.bf16.mxu0 0
  %690 = vmatpush1.bf16.msra.mxu0 %v475
  %691 = vmatprep.subr.bf16.mxu0 0
  %692 = vmatpush2.bf16.msra.mxu0 0
  %693 = vmatprep.subr.bf16.mxu0 0
  %694 = vmatpush2.bf16.msra.mxu0 0
  %695 = vmatprep.subr.bf16.mxu0 0
  %696 = vmatpush2.bf16.msra.mxu0 0
  %697 = vmatprep.subr.bf16.mxu0 0
  %698 = vmatpush2.bf16.msra.mxu0 0
  %699 = vmatprep.subr.bf16.mxu0 0
  %700 = vmatpush2.bf16.msra.mxu0 0
  %701 = vmatprep.subr.bf16.mxu0 0
  %702 = vmatpush2.bf16.msra.mxu0 0
  %703 = vmatprep.subr.bf16.mxu0 0
  %704 = vmatpush2.bf16.msra.mxu0 0
  %705 = vmatprep.subr.bf16.mxu0 0
  %706 = vmatpush2.bf16.msra.mxu0 0
  %707 = vmatprep.mubr.bf16.mxu0 0
  %708 = vmatmul.mubr.bf16.gmra.mxu0 %v480
  %v709 = vpop.f32.mrf.mxu0
  %v710 = vadd.f32 0.0, %v709
  %v711 = vpop.f32.mrf.mxu0
  %v712 = vpop.f32.mrf.mxu0
  %v713 = vadd.f32 0.0, %v712
  %v714 = vpop.f32.mrf.mxu0
  %715 = vmatprep.mubr.bf16.mxu0 0
  %716 = vmatmul.mubr.bf16.gmra.mxu0 %v483
  %v717 = vpop.f32.mrf.mxu0
  %v718 = vadd.f32 0.0, %v717
  %v719 = vpop.f32.mrf.mxu0
  %v720 = vpop.f32.mrf.mxu0
  %v721 = vadd.f32 0.0, %v720
  %v722 = vpop.f32.mrf.mxu0
  %723 = vmatprep.mubr.bf16.mxu0 0
  %724 = vmatmul.mubr.bf16.gmra.mxu0 %v486
  %v725 = vpop.f32.mrf.mxu0
  %v726 = vadd.f32 0.0, %v725
  %v727 = vpop.f32.mrf.mxu0
  %v728 = vpop.f32.mrf.mxu0
  %v729 = vadd.f32 0.0, %v728
  %v730 = vpop.f32.mrf.mxu0
  %731 = vmatprep.mubr.bf16.mxu0 0
  %732 = vmatmul.mubr.bf16.gmra.mxu0 %v489
  %v733 = vpop.f32.mrf.mxu0
  %v734 = vadd.f32 0.0, %v733
  %v735 = vpop.f32.mrf.mxu0
  %v736 = vpop.f32.mrf.mxu0
  %v737 = vadd.f32 0.0, %v736
  %v738 = vpop.f32.mrf.mxu0
  %739 = vmatprep.mubr.bf16.mxu0 0
  %740 = vmatmul.mubr.bf16.gmra.mxu0 %v492
  %v741 = vpop.f32.mrf.mxu0
  %v742 = vadd.f32 0.0, %v741
  %v743 = vpop.f32.mrf.mxu0
  %v744 = vpop.f32.mrf.mxu0
  %v745 = vadd.f32 0.0, %v744
  %v746 = vpop.f32.mrf.mxu0
  %747 = vmatprep.mubr.bf16.mxu0 0
  %748 = vmatmul.mubr.bf16.gmra.mxu0 %v495
  %v749 = vpop.f32.mrf.mxu0
  %v750 = vadd.f32 0.0, %v749
  %v751 = vpop.f32.mrf.mxu0
  %v752 = vpop.f32.mrf.mxu0
  %v753 = vadd.f32 0.0, %v752
  %v754 = vpop.f32.mrf.mxu0
  %755 = vmatprep.mubr.bf16.mxu0 0
  %756 = vmatmul.mubr.bf16.gmra.mxu0 %v498
  %v757 = vpop.f32.mrf.mxu0
  %v758 = vadd.f32 0.0, %v757
  %v759 = vpop.f32.mrf.mxu0
  %v760 = vpop.f32.mrf.mxu0
  %v761 = vadd.f32 0.0, %v760
  %v762 = vpop.f32.mrf.mxu0
  %763 = vmatprep.mubr.bf16.mxu0 0
  %764 = vmatmul.mubr.bf16.gmra.mxu0 %v501
  %v765 = vpop.f32.mrf.mxu0
  %v766 = vadd.f32 0.0, %v765
  %v767 = vpop.f32.mrf.mxu0
  %v768 = vpop.f32.mrf.mxu0
  %v769 = vadd.f32 0.0, %v768
  %v770 = vpop.f32.mrf.mxu0
  %771 = vmatprep.mubr.bf16.mxu0 0
  %772 = vmatmul.mubr.bf16.gmra.mxu0 %v504
  %v773 = vpop.f32.mrf.mxu0
  %v774 = vadd.f32 0.0, %v773
  %v775 = vpop.f32.mrf.mxu0
  %v776 = vpop.f32.mrf.mxu0
  %v777 = vadd.f32 0.0, %v776
  %v778 = vpop.f32.mrf.mxu0
  %779 = vmatprep.mubr.bf16.mxu0 0
  %780 = vmatmul.mubr.bf16.gmra.mxu0 %v507
  %v781 = vpop.f32.mrf.mxu0
  %v782 = vadd.f32 0.0, %v781
  %v783 = vpop.f32.mrf.mxu0
  %v784 = vpop.f32.mrf.mxu0
  %v785 = vadd.f32 0.0, %v784
  %v786 = vpop.f32.mrf.mxu0
  %787 = vmatprep.mubr.bf16.mxu0 0
  %788 = vmatmul.mubr.bf16.gmra.mxu0 %v510
  %v789 = vpop.f32.mrf.mxu0
  %v790 = vadd.f32 0.0, %v789
  %v791 = vpop.f32.mrf.mxu0
  %v792 = vpop.f32.mrf.mxu0
  %v793 = vadd.f32 0.0, %v792
  %v794 = vpop.f32.mrf.mxu0
  %795 = vmatprep.mubr.bf16.mxu0 0
  %796 = vmatmul.mubr.bf16.gmra.mxu0 %v513
  %v797 = vpop.f32.mrf.mxu0
  %v798 = vadd.f32 0.0, %v797
  %v799 = vpop.f32.mrf.mxu0
  %v800 = vpop.f32.mrf.mxu0
  %v801 = vadd.f32 0.0, %v800
  %v802 = vpop.f32.mrf.mxu0
  %803 = vmatprep.mubr.bf16.mxu0 0
  %804 = vmatmul.mubr.bf16.gmra.mxu0 %v516
  %v805 = vpop.f32.mrf.mxu0
  %v806 = vadd.f32 0.0, %v805
  %v807 = vpop.f32.mrf.mxu0
  %v808 = vpop.f32.mrf.mxu0
  %v809 = vadd.f32 0.0, %v808
  %v810 = vpop.f32.mrf.mxu0
  %811 = vmatprep.mubr.bf16.mxu0 0
  %812 = vmatmul.mubr.bf16.gmra.mxu0 %v519
  %v813 = vpop.f32.mrf.mxu0
  %v814 = vadd.f32 0.0, %v813
  %v815 = vpop.f32.mrf.mxu0
  %v816 = vpop.f32.mrf.mxu0
  %v817 = vadd.f32 0.0, %v816
  %v818 = vpop.f32.mrf.mxu0
  %819 = vmatprep.mubr.bf16.mxu0 0
  %820 = vmatmul.mubr.bf16.gmra.mxu0 %v522
  %v821 = vpop.f32.mrf.mxu0
  %v822 = vadd.f32 0.0, %v821
  %v823 = vpop.f32.mrf.mxu0
  %v824 = vpop.f32.mrf.mxu0
  %v825 = vadd.f32 0.0, %v824
  %v826 = vpop.f32.mrf.mxu0
  %827 = vmatprep.mubr.bf16.mxu0 0
  %828 = vmatmul.mubr.bf16.gmra.mxu0 %v525
  %v829 = vpop.f32.mrf.mxu0
  %v830 = vadd.f32 0.0, %v829
  %v831 = vpop.f32.mrf.mxu0
  %v832 = vpop.f32.mrf.mxu0
  %v833 = vadd.f32 0.0, %v832
  %v834 = vpop.f32.mrf.mxu0
  %835 = vmatprep.mubr.bf16.mxu0 0
  %836 = vmatmul.mubr.bf16.gmra.mxu0 %v528
  %v837 = vpop.f32.mrf.mxu0
  %v838 = vadd.f32 0.0, %v837
  %v839 = vpop.f32.mrf.mxu0
  %v840 = vpop.f32.mrf.mxu0
  %v841 = vadd.f32 0.0, %v840
  %v842 = vpop.f32.mrf.mxu0
  %843 = vmatprep.mubr.bf16.mxu0 0
  %844 = vmatmul.mubr.bf16.gmra.mxu0 %v531
  %v845 = vpop.f32.mrf.mxu0
  %v846 = vadd.f32 0.0, %v845
  %v847 = vpop.f32.mrf.mxu0
  %v848 = vpop.f32.mrf.mxu0
  %v849 = vadd.f32 0.0, %v848
  %v850 = vpop.f32.mrf.mxu0
  %851 = vmatprep.mubr.bf16.mxu0 0
  %852 = vmatmul.mubr.bf16.gmra.mxu0 %v534
  %v853 = vpop.f32.mrf.mxu0
  %v854 = vadd.f32 0.0, %v853
  %v855 = vpop.f32.mrf.mxu0
  %v856 = vpop.f32.mrf.mxu0
  %v857 = vadd.f32 0.0, %v856
  %v858 = vpop.f32.mrf.mxu0
  %859 = vmatprep.mubr.bf16.mxu0 0
  %860 = vmatmul.mubr.bf16.gmra.mxu0 %v537
  %v861 = vpop.f32.mrf.mxu0
  %v862 = vadd.f32 0.0, %v861
  %v863 = vpop.f32.mrf.mxu0
  %v864 = vpop.f32.mrf.mxu0
  %v865 = vadd.f32 0.0, %v864
  %v866 = vpop.f32.mrf.mxu0
  %867 = vmatprep.mubr.bf16.mxu0 0
  %868 = vmatmul.mubr.bf16.gmra.mxu0 %v540
  %v869 = vpop.f32.mrf.mxu0
  %v870 = vadd.f32 0.0, %v869
  %v871 = vpop.f32.mrf.mxu0
  %v872 = vpop.f32.mrf.mxu0
  %v873 = vadd.f32 0.0, %v872
  %v874 = vpop.f32.mrf.mxu0
  %875 = vmatprep.mubr.bf16.mxu0 0
  %876 = vmatmul.mubr.bf16.gmra.mxu0 %v543
  %v877 = vpop.f32.mrf.mxu0
  %v878 = vadd.f32 0.0, %v877
  %v879 = vpop.f32.mrf.mxu0
  %v880 = vpop.f32.mrf.mxu0
  %v881 = vadd.f32 0.0, %v880
  %v882 = vpop.f32.mrf.mxu0
  %883 = vmatprep.mubr.bf16.mxu0 0
  %884 = vmatmul.mubr.bf16.gmra.mxu0 %v546
  %v885 = vpop.f32.mrf.mxu0
  %v886 = vadd.f32 0.0, %v885
  %v887 = vpop.f32.mrf.mxu0
  %v888 = vpop.f32.mrf.mxu0
  %v889 = vadd.f32 0.0, %v888
  %v890 = vpop.f32.mrf.mxu0
  %891 = vmatprep.mubr.bf16.mxu0 0
  %892 = vmatmul.mubr.bf16.gmra.mxu0 %v549
  %v893 = vpop.f32.mrf.mxu0
  %v894 = vadd.f32 0.0, %v893
  %v895 = vpop.f32.mrf.mxu0
  %v896 = vpop.f32.mrf.mxu0
  %v897 = vadd.f32 0.0, %v896
  %v898 = vpop.f32.mrf.mxu0
  %899 = vmatprep.mubr.bf16.mxu0 0
  %900 = vmatmul.mubr.bf16.gmra.mxu0 %v552
  %v901 = vpop.f32.mrf.mxu0
  %v902 = vadd.f32 0.0, %v901
  %v903 = vpop.f32.mrf.mxu0
  %v904 = vpop.f32.mrf.mxu0
  %v905 = vadd.f32 0.0, %v904
  %v906 = vpop.f32.mrf.mxu0
  %907 = vmatprep.mubr.bf16.mxu0 0
  %908 = vmatmul.mubr.bf16.gmra.mxu0 %v555
  %v909 = vpop.f32.mrf.mxu0
  %v910 = vadd.f32 0.0, %v909
  %v911 = vpop.f32.mrf.mxu0
  %v912 = vpop.f32.mrf.mxu0
  %v913 = vadd.f32 0.0, %v912
  %v914 = vpop.f32.mrf.mxu0
  %915 = vmatprep.mubr.bf16.mxu0 0
  %916 = vmatmul.mubr.bf16.gmra.mxu0 %v558
  %v917 = vpop.f32.mrf.mxu0
  %v918 = vadd.f32 0.0, %v917
  %v919 = vpop.f32.mrf.mxu0
  %v920 = vpop.f32.mrf.mxu0
  %v921 = vadd.f32 0.0, %v920
  %v922 = vpop.f32.mrf.mxu0
  %923 = vmatprep.mubr.bf16.mxu0 0
  %924 = vmatmul.mubr.bf16.gmra.mxu0 %v561
  %v925 = vpop.f32.mrf.mxu0
  %v926 = vadd.f32 0.0, %v925
  %v927 = vpop.f32.mrf.mxu0
  %v928 = vpop.f32.mrf.mxu0
  %v929 = vadd.f32 0.0, %v928
  %v930 = vpop.f32.mrf.mxu0
  %931 = vmatprep.mubr.bf16.mxu0 0
  %932 = vmatmul.mubr.bf16.gmra.mxu0 %v564
  %v933 = vpop.f32.mrf.mxu0
  %v934 = vadd.f32 0.0, %v933
  %v935 = vpop.f32.mrf.mxu0
  %v936 = vpop.f32.mrf.mxu0
  %v937 = vadd.f32 0.0, %v936
  %v938 = vpop.f32.mrf.mxu0
  %939 = vmatprep.mubr.bf16.mxu0 0
  %940 = vmatmul.mubr.bf16.gmra.mxu0 %v567
  %v941 = vpop.f32.mrf.mxu0
  %v942 = vadd.f32 0.0, %v941
  %v943 = vpop.f32.mrf.mxu0
  %v944 = vpop.f32.mrf.mxu0
  %v945 = vadd.f32 0.0, %v944
  %v946 = vpop.f32.mrf.mxu0
  %947 = vmatprep.mubr.bf16.mxu0 0
  %948 = vmatmul.mubr.bf16.gmra.mxu0 %v570
  %v949 = vpop.f32.mrf.mxu0
  %v950 = vadd.f32 0.0, %v949
  %v951 = vpop.f32.mrf.mxu0
  %v952 = vpop.f32.mrf.mxu0
  %v953 = vadd.f32 0.0, %v952
  %v954 = vpop.f32.mrf.mxu0
  %955 = vmatprep.mubr.bf16.mxu0 0
  %956 = vmatmul.mubr.bf16.gmra.mxu0 %v573
  %v957 = vpop.f32.mrf.mxu0
  %v958 = vadd.f32 0.0, %v957
  %v959 = vpop.f32.mrf.mxu0
  %v960 = vpop.f32.mrf.mxu0
  %v961 = vadd.f32 0.0, %v960
  %v962 = vpop.f32.mrf.mxu0
  %963 = vmatprep.mubr.bf16.mxu0 0
  %964 = vmatmul.mubr.bf16.gmra.mxu0 %v576
  %v965 = vpop.f32.mrf.mxu0
  %v966 = vadd.f32 0.0, %v965
  %v967 = vpop.f32.mrf.mxu0
  %v968 = vpop.f32.mrf.mxu0
  %v969 = vadd.f32 0.0, %v968
  %v970 = vpop.f32.mrf.mxu0
  %971 = vmatprep.mubr.bf16.mxu0 0
  %972 = vmatmul.mubr.bf16.gmra.mxu0 %v579
  %v973 = vpop.f32.mrf.mxu0
  %v974 = vadd.f32 0.0, %v973
  %v975 = vpop.f32.mrf.mxu0
  %v976 = vpop.f32.mrf.mxu0
  %v977 = vadd.f32 0.0, %v976
  %v978 = vpop.f32.mrf.mxu0
  %979 = vmatprep.mubr.bf16.mxu0 0
  %980 = vmatmul.mubr.bf16.gmra.mxu0 %v582
  %v981 = vpop.f32.mrf.mxu0
  %v982 = vadd.f32 0.0, %v981
  %v983 = vpop.f32.mrf.mxu0
  %v984 = vpop.f32.mrf.mxu0
  %v985 = vadd.f32 0.0, %v984
  %v986 = vpop.f32.mrf.mxu0
  %987 = vmatprep.mubr.bf16.mxu0 0
  %988 = vmatmul.mubr.bf16.gmra.mxu0 %v585
  %v989 = vpop.f32.mrf.mxu0
  %v990 = vadd.f32 0.0, %v989
  %v991 = vpop.f32.mrf.mxu0
  %v992 = vpop.f32.mrf.mxu0
  %v993 = vadd.f32 0.0, %v992
  %v994 = vpop.f32.mrf.mxu0
  %995 = vmatprep.mubr.bf16.mxu0 0
  %996 = vmatmul.mubr.bf16.gmra.mxu0 %v588
  %v997 = vpop.f32.mrf.mxu0
  %v998 = vadd.f32 0.0, %v997
  %v999 = vpop.f32.mrf.mxu0
  %v1000 = vpop.f32.mrf.mxu0
  %v1001 = vadd.f32 0.0, %v1000
  %v1002 = vpop.f32.mrf.mxu0
  %1003 = vmatprep.mubr.bf16.mxu0 0
  %1004 = vmatmul.mubr.bf16.gmra.mxu0 %v591
  %v1005 = vpop.f32.mrf.mxu0
  %v1006 = vadd.f32 0.0, %v1005
  %v1007 = vpop.f32.mrf.mxu0
  %v1008 = vpop.f32.mrf.mxu0
  %v1009 = vadd.f32 0.0, %v1008
  %v1010 = vpop.f32.mrf.mxu0
  %1011 = vmatprep.mubr.bf16.mxu0 0
  %1012 = vmatmul.mubr.bf16.gmra.mxu0 %v594
  %v1013 = vpop.f32.mrf.mxu0
  %v1014 = vadd.f32 0.0, %v1013
  %v1015 = vpop.f32.mrf.mxu0
  %v1016 = vpop.f32.mrf.mxu0
  %v1017 = vadd.f32 0.0, %v1016
  %v1018 = vpop.f32.mrf.mxu0
  %1019 = vmatprep.mubr.bf16.mxu0 0
  %1020 = vmatmul.mubr.bf16.gmra.mxu0 %v597
  %v1021 = vpop.f32.mrf.mxu0
  %v1022 = vadd.f32 0.0, %v1021
  %v1023 = vpop.f32.mrf.mxu0
  %v1024 = vpop.f32.mrf.mxu0
  %v1025 = vadd.f32 0.0, %v1024
  %v1026 = vpop.f32.mrf.mxu0
  %1027 = vmatprep.mubr.bf16.mxu0 0
  %1028 = vmatmul.mubr.bf16.gmra.mxu0 %v600
  %v1029 = vpop.f32.mrf.mxu0
  %v1030 = vadd.f32 0.0, %v1029
  %v1031 = vpop.f32.mrf.mxu0
  %v1032 = vpop.f32.mrf.mxu0
  %v1033 = vadd.f32 0.0, %v1032
  %v1034 = vpop.f32.mrf.mxu0
  %1035 = vmatprep.mubr.bf16.mxu0 0
  %1036 = vmatmul.mubr.bf16.gmra.mxu0 %v603
  %v1037 = vpop.f32.mrf.mxu0
  %v1038 = vadd.f32 0.0, %v1037
  %v1039 = vpop.f32.mrf.mxu0
  %v1040 = vpop.f32.mrf.mxu0
  %v1041 = vadd.f32 0.0, %v1040
  %v1042 = vpop.f32.mrf.mxu0
  %1043 = vmatprep.mubr.bf16.mxu0 0
  %1044 = vmatmul.mubr.bf16.gmra.mxu0 %v606
  %v1045 = vpop.f32.mrf.mxu0
  %v1046 = vadd.f32 0.0, %v1045
  %v1047 = vpop.f32.mrf.mxu0
  %v1048 = vpop.f32.mrf.mxu0
  %v1049 = vadd.f32 0.0, %v1048
  %v1050 = vpop.f32.mrf.mxu0
  %1051 = vmatprep.mubr.bf16.mxu0 0
  %1052 = vmatmul.mubr.bf16.gmra.mxu0 %v609
  %v1053 = vpop.f32.mrf.mxu0
  %v1054 = vadd.f32 0.0, %v1053
  %v1055 = vpop.f32.mrf.mxu0
  %v1056 = vpop.f32.mrf.mxu0
  %v1057 = vadd.f32 0.0, %v1056
  %v1058 = vpop.f32.mrf.mxu0
  %1059 = vmatprep.mubr.bf16.mxu0 0
  %1060 = vmatmul.mubr.bf16.gmra.mxu0 %v612
  %v1061 = vpop.f32.mrf.mxu0
  %v1062 = vadd.f32 0.0, %v1061
  %v1063 = vpop.f32.mrf.mxu0
  %v1064 = vpop.f32.mrf.mxu0
  %v1065 = vadd.f32 0.0, %v1064
  %v1066 = vpop.f32.mrf.mxu0
  %1067 = vmatprep.mubr.bf16.mxu0 0
  %1068 = vmatmul.mubr.bf16.gmra.mxu0 %v615
  %v1069 = vpop.f32.mrf.mxu0
  %v1070 = vadd.f32 0.0, %v1069
  %v1071 = vpop.f32.mrf.mxu0
  %v1072 = vpop.f32.mrf.mxu0
  %v1073 = vadd.f32 0.0, %v1072
  %v1074 = vpop.f32.mrf.mxu0
  %1075 = vmatprep.mubr.bf16.mxu0 0
  %1076 = vmatmul.mubr.bf16.gmra.mxu0 %v618
  %v1077 = vpop.f32.mrf.mxu0
  %v1078 = vadd.f32 0.0, %v1077
  %v1079 = vpop.f32.mrf.mxu0
  %v1080 = vpop.f32.mrf.mxu0
  %v1081 = vadd.f32 0.0, %v1080
  %v1082 = vpop.f32.mrf.mxu0
  %1083 = vmatprep.mubr.bf16.mxu0 0
  %1084 = vmatmul.mubr.bf16.gmra.mxu0 %v621
  %v1085 = vpop.f32.mrf.mxu0
  %v1086 = vadd.f32 0.0, %v1085
  %v1087 = vpop.f32.mrf.mxu0
  %v1088 = vpop.f32.mrf.mxu0
  %v1089 = vadd.f32 0.0, %v1088
  %v1090 = vpop.f32.mrf.mxu0
  %1091 = vmatprep.mubr.bf16.mxu0 0
  %1092 = vmatmul.mubr.bf16.gmra.mxu0 %v624
  %v1093 = vpop.f32.mrf.mxu0
  %v1094 = vadd.f32 0.0, %v1093
  %v1095 = vpop.f32.mrf.mxu0
  %v1096 = vpop.f32.mrf.mxu0
  %v1097 = vadd.f32 0.0, %v1096
  %v1098 = vpop.f32.mrf.mxu0
  %1099 = vmatprep.mubr.bf16.mxu0 0
  %1100 = vmatmul.mubr.bf16.gmra.mxu0 %v627
  %v1101 = vpop.f32.mrf.mxu0
  %v1102 = vadd.f32 0.0, %v1101
  %v1103 = vpop.f32.mrf.mxu0
  %v1104 = vpop.f32.mrf.mxu0
  %v1105 = vadd.f32 0.0, %v1104
  %v1106 = vpop.f32.mrf.mxu0
  %1107 = vmatprep.mubr.bf16.mxu0 0
  %1108 = vmatmul.mubr.bf16.gmra.mxu0 %v630
  %v1109 = vpop.f32.mrf.mxu0
  %v1110 = vadd.f32 0.0, %v1109
  %v1111 = vpop.f32.mrf.mxu0
  %v1112 = vpop.f32.mrf.mxu0
  %v1113 = vadd.f32 0.0, %v1112
  %v1114 = vpop.f32.mrf.mxu0
  %1115 = vmatprep.mubr.bf16.mxu0 0
  %1116 = vmatmul.mubr.bf16.gmra.mxu0 %v633
  %v1117 = vpop.f32.mrf.mxu0
  %v1118 = vadd.f32 0.0, %v1117
  %v1119 = vpop.f32.mrf.mxu0
  %v1120 = vpop.f32.mrf.mxu0
  %v1121 = vadd.f32 0.0, %v1120
  %v1122 = vpop.f32.mrf.mxu0
  %1123 = vmatprep.mubr.bf16.mxu0 0
  %1124 = vmatmul.mubr.bf16.gmra.mxu0 %v636
  %v1125 = vpop.f32.mrf.mxu0
  %v1126 = vadd.f32 0.0, %v1125
  %v1127 = vpop.f32.mrf.mxu0
  %v1128 = vpop.f32.mrf.mxu0
  %v1129 = vadd.f32 0.0, %v1128
  %v1130 = vpop.f32.mrf.mxu0
  %1131 = vmatprep.mubr.bf16.mxu0 0
  %1132 = vmatmul.mubr.bf16.gmra.mxu0 %v639
  %v1133 = vpop.f32.mrf.mxu0
  %v1134 = vadd.f32 0.0, %v1133
  %v1135 = vpop.f32.mrf.mxu0
  %v1136 = vpop.f32.mrf.mxu0
  %v1137 = vadd.f32 0.0, %v1136
  %v1138 = vpop.f32.mrf.mxu0
  %1139 = vmatprep.mubr.bf16.mxu0 0
  %1140 = vmatmul.mubr.bf16.gmra.mxu0 %v642
  %v1141 = vpop.f32.mrf.mxu0
  %v1142 = vadd.f32 0.0, %v1141
  %v1143 = vpop.f32.mrf.mxu0
  %v1144 = vpop.f32.mrf.mxu0
  %v1145 = vadd.f32 0.0, %v1144
  %v1146 = vpop.f32.mrf.mxu0
  %1147 = vmatprep.mubr.bf16.mxu0 0
  %1148 = vmatmul.mubr.bf16.gmra.mxu0 %v645
  %v1149 = vpop.f32.mrf.mxu0
  %v1150 = vadd.f32 0.0, %v1149
  %v1151 = vpop.f32.mrf.mxu0
  %v1152 = vpop.f32.mrf.mxu0
  %v1153 = vadd.f32 0.0, %v1152
  %v1154 = vpop.f32.mrf.mxu0
  %1155 = vmatprep.mubr.bf16.mxu0 0
  %1156 = vmatmul.mubr.bf16.gmra.mxu0 %v648
  %v1157 = vpop.f32.mrf.mxu0
  %v1158 = vadd.f32 0.0, %v1157
  %v1159 = vpop.f32.mrf.mxu0
  %v1160 = vpop.f32.mrf.mxu0
  %v1161 = vadd.f32 0.0, %v1160
  %v1162 = vpop.f32.mrf.mxu0
  %1163 = vmatprep.mubr.bf16.mxu0 0
  %1164 = vmatmul.mubr.bf16.gmra.mxu0 %v651
  %v1165 = vpop.f32.mrf.mxu0
  %v1166 = vadd.f32 0.0, %v1165
  %v1167 = vpop.f32.mrf.mxu0
  %v1168 = vpop.f32.mrf.mxu0
  %v1169 = vadd.f32 0.0, %v1168
  %v1170 = vpop.f32.mrf.mxu0
  %1171 = vmatprep.mubr.bf16.mxu0 0
  %1172 = vmatmul.mubr.bf16.gmra.mxu0 %v654
  %v1173 = vpop.f32.mrf.mxu0
  %v1174 = vadd.f32 0.0, %v1173
  %v1175 = vpop.f32.mrf.mxu0
  %v1176 = vpop.f32.mrf.mxu0
  %v1177 = vadd.f32 0.0, %v1176
  %v1178 = vpop.f32.mrf.mxu0
  %1179 = vmatprep.mubr.bf16.mxu0 0
  %1180 = vmatmul.mubr.bf16.gmra.mxu0 %v657
  %v1181 = vpop.f32.mrf.mxu0
  %v1182 = vadd.f32 0.0, %v1181
  %v1183 = vpop.f32.mrf.mxu0
  %v1184 = vpop.f32.mrf.mxu0
  %v1185 = vadd.f32 0.0, %v1184
  %v1186 = vpop.f32.mrf.mxu0
  %1187 = vmatprep.mubr.bf16.mxu0 0
  %1188 = vmatmul.mubr.bf16.gmra.mxu0 %v660
  %v1189 = vpop.f32.mrf.mxu0
  %v1190 = vadd.f32 0.0, %v1189
  %v1191 = vpop.f32.mrf.mxu0
  %v1192 = vpop.f32.mrf.mxu0
  %v1193 = vadd.f32 0.0, %v1192
  %v1194 = vpop.f32.mrf.mxu0
  %1195 = vmatprep.mubr.bf16.mxu0 0
  %1196 = vmatmul.mubr.bf16.gmra.mxu0 %v663
  %v1197 = vpop.f32.mrf.mxu0
  %v1198 = vadd.f32 0.0, %v1197
  %v1199 = vpop.f32.mrf.mxu0
  %v1200 = vpop.f32.mrf.mxu0
  %v1201 = vadd.f32 0.0, %v1200
  %v1202 = vpop.f32.mrf.mxu0
  %1203 = vmatprep.mubr.bf16.mxu0 0
  %1204 = vmatmul.mubr.bf16.gmra.mxu0 %v666
  %v1205 = vpop.f32.mrf.mxu0
  %v1206 = vadd.f32 0.0, %v1205
  %v1207 = vpop.f32.mrf.mxu0
  %v1208 = vpop.f32.mrf.mxu0
  %v1209 = vadd.f32 0.0, %v1208
  %v1210 = vpop.f32.mrf.mxu0
  %1211 = vmatprep.mubr.bf16.mxu0 0
  %1212 = vmatmul.mubr.bf16.gmra.mxu0 %v669
  %v1213 = vpop.f32.mrf.mxu0
  %v1214 = vadd.f32 0.0, %v1213
  %v1215 = vpop.f32.mrf.mxu0
  %v1216 = vpop.f32.mrf.mxu0
  %v1217 = vadd.f32 0.0, %v1216
  %v1218 = vpop.f32.mrf.mxu0
  %1219 = vdwg.mxu0
  %vm1220 = vcmp.gt.f32.partialorder %v710, 0.0
  %vm1221 = vcmp.gt.f32.partialorder %v713, 0.0
  %vm1222 = vcmp.gt.f32.partialorder %v718, 0.0
  %vm1223 = vcmp.gt.f32.partialorder %v721, 0.0
  %vm1224 = vcmp.gt.f32.partialorder %v726, 0.0
  %vm1225 = vcmp.gt.f32.partialorder %v729, 0.0
  %vm1226 = vcmp.gt.f32.partialorder %v734, 0.0
  %vm1227 = vcmp.gt.f32.partialorder %v737, 0.0
  %vm1228 = vcmp.gt.f32.partialorder %v742, 0.0
  %vm1229 = vcmp.gt.f32.partialorder %v745, 0.0
  %vm1230 = vcmp.gt.f32.partialorder %v750, 0.0
  %vm1231 = vcmp.gt.f32.partialorder %v753, 0.0
  %vm1232 = vcmp.gt.f32.partialorder %v758, 0.0
  %vm1233 = vcmp.gt.f32.partialorder %v761, 0.0
  %vm1234 = vcmp.gt.f32.partialorder %v766, 0.0
  %vm1235 = vcmp.gt.f32.partialorder %v769, 0.0
  %vm1236 = vcmp.gt.f32.partialorder %v774, 0.0
  %vm1237 = vcmp.gt.f32.partialorder %v777, 0.0
  %vm1238 = vcmp.gt.f32.partialorder %v782, 0.0
  %vm1239 = vcmp.gt.f32.partialorder %v785, 0.0
  %vm1240 = vcmp.gt.f32.partialorder %v790, 0.0
  %vm1241 = vcmp.gt.f32.partialorder %v793, 0.0
  %vm1242 = vcmp.gt.f32.partialorder %v798, 0.0
  %vm1243 = vcmp.gt.f32.partialorder %v801, 0.0
  %vm1244 = vcmp.gt.f32.partialorder %v806, 0.0
  %vm1245 = vcmp.gt.f32.partialorder %v809, 0.0
  %vm1246 = vcmp.gt.f32.partialorder %v814, 0.0
  %vm1247 = vcmp.gt.f32.partialorder %v817, 0.0
  %vm1248 = vcmp.gt.f32.partialorder %v822, 0.0
  %vm1249 = vcmp.gt.f32.partialorder %v825, 0.0
  %vm1250 = vcmp.gt.f32.partialorder %v830, 0.0
  %vm1251 = vcmp.gt.f32.partialorder %v833, 0.0
  %vm1252 = vcmp.gt.f32.partialorder %v838, 0.0
  %vm1253 = vcmp.gt.f32.partialorder %v841, 0.0
  %vm1254 = vcmp.gt.f32.partialorder %v846, 0.0
  %vm1255 = vcmp.gt.f32.partialorder %v849, 0.0
  %vm1256 = vcmp.gt.f32.partialorder %v854, 0.0
  %vm1257 = vcmp.gt.f32.partialorder %v857, 0.0
  %vm1258 = vcmp.gt.f32.partialorder %v862, 0.0
  %vm1259 = vcmp.gt.f32.partialorder %v865, 0.0
  %vm1260 = vcmp.gt.f32.partialorder %v870, 0.0
  %vm1261 = vcmp.gt.f32.partialorder %v873, 0.0
  %vm1262 = vcmp.gt.f32.partialorder %v878, 0.0
  %vm1263 = vcmp.gt.f32.partialorder %v881, 0.0
  %vm1264 = vcmp.gt.f32.partialorder %v886, 0.0
  %vm1265 = vcmp.gt.f32.partialorder %v889, 0.0
  %vm1266 = vcmp.gt.f32.partialorder %v894, 0.0
  %vm1267 = vcmp.gt.f32.partialorder %v897, 0.0
  %vm1268 = vcmp.gt.f32.partialorder %v902, 0.0
  %vm1269 = vcmp.gt.f32.partialorder %v905, 0.0
  %vm1270 = vcmp.gt.f32.partialorder %v910, 0.0
  %vm1271 = vcmp.gt.f32.partialorder %v913, 0.0
  %vm1272 = vcmp.gt.f32.partialorder %v918, 0.0
  %vm1273 = vcmp.gt.f32.partialorder %v921, 0.0
  %vm1274 = vcmp.gt.f32.partialorder %v926, 0.0
  %vm1275 = vcmp.gt.f32.partialorder %v929, 0.0
  %vm1276 = vcmp.gt.f32.partialorder %v934, 0.0
  %vm1277 = vcmp.gt.f32.partialorder %v937, 0.0
  %vm1278 = vcmp.gt.f32.partialorder %v942, 0.0
  %vm1279 = vcmp.gt.f32.partialorder %v945, 0.0
  %vm1280 = vcmp.gt.f32.partialorder %v950, 0.0
  %vm1281 = vcmp.gt.f32.partialorder %v953, 0.0
  %vm1282 = vcmp.gt.f32.partialorder %v958, 0.0
  %vm1283 = vcmp.gt.f32.partialorder %v961, 0.0
  %vm1284 = vcmp.gt.f32.partialorder %v966, 0.0
  %vm1285 = vcmp.gt.f32.partialorder %v969, 0.0
  %vm1286 = vcmp.gt.f32.partialorder %v974, 0.0
  %vm1287 = vcmp.gt.f32.partialorder %v977, 0.0
  %vm1288 = vcmp.gt.f32.partialorder %v982, 0.0
  %vm1289 = vcmp.gt.f32.partialorder %v985, 0.0
  %vm1290 = vcmp.gt.f32.partialorder %v990, 0.0
  %vm1291 = vcmp.gt.f32.partialorder %v993, 0.0
  %vm1292 = vcmp.gt.f32.partialorder %v998, 0.0
  %vm1293 = vcmp.gt.f32.partialorder %v1001, 0.0
  %vm1294 = vcmp.gt.f32.partialorder %v1006, 0.0
  %vm1295 = vcmp.gt.f32.partialorder %v1009, 0.0
  %vm1296 = vcmp.gt.f32.partialorder %v1014, 0.0
  %vm1297 = vcmp.gt.f32.partialorder %v1017, 0.0
  %vm1298 = vcmp.gt.f32.partialorder %v1022, 0.0
  %vm1299 = vcmp.gt.f32.partialorder %v1025, 0.0
  %vm1300 = vcmp.gt.f32.partialorder %v1030, 0.0
  %vm1301 = vcmp.gt.f32.partialorder %v1033, 0.0
  %vm1302 = vcmp.gt.f32.partialorder %v1038, 0.0
  %vm1303 = vcmp.gt.f32.partialorder %v1041, 0.0
  %vm1304 = vcmp.gt.f32.partialorder %v1046, 0.0
  %vm1305 = vcmp.gt.f32.partialorder %v1049, 0.0
  %vm1306 = vcmp.gt.f32.partialorder %v1054, 0.0
  %vm1307 = vcmp.gt.f32.partialorder %v1057, 0.0
  %vm1308 = vcmp.gt.f32.partialorder %v1062, 0.0
  %vm1309 = vcmp.gt.f32.partialorder %v1065, 0.0
  %vm1310 = vcmp.gt.f32.partialorder %v1070, 0.0
  %vm1311 = vcmp.gt.f32.partialorder %v1073, 0.0
  %vm1312 = vcmp.gt.f32.partialorder %v1078, 0.0
  %vm1313 = vcmp.gt.f32.partialorder %v1081, 0.0
  %vm1314 = vcmp.gt.f32.partialorder %v1086, 0.0
  %vm1315 = vcmp.gt.f32.partialorder %v1089, 0.0
  %vm1316 = vcmp.gt.f32.partialorder %v1094, 0.0
  %vm1317 = vcmp.gt.f32.partialorder %v1097, 0.0
  %vm1318 = vcmp.gt.f32.partialorder %v1102, 0.0
  %vm1319 = vcmp.gt.f32.partialorder %v1105, 0.0
  %vm1320 = vcmp.gt.f32.partialorder %v1110, 0.0
  %vm1321 = vcmp.gt.f32.partialorder %v1113, 0.0
  %vm1322 = vcmp.gt.f32.partialorder %v1118, 0.0
  %vm1323 = vcmp.gt.f32.partialorder %v1121, 0.0
  %vm1324 = vcmp.gt.f32.partialorder %v1126, 0.0
  %vm1325 = vcmp.gt.f32.partialorder %v1129, 0.0
  %vm1326 = vcmp.gt.f32.partialorder %v1134, 0.0
  %vm1327 = vcmp.gt.f32.partialorder %v1137, 0.0
  %vm1328 = vcmp.gt.f32.partialorder %v1142, 0.0
  %vm1329 = vcmp.gt.f32.partialorder %v1145, 0.0
  %vm1330 = vcmp.gt.f32.partialorder %v1150, 0.0
  %vm1331 = vcmp.gt.f32.partialorder %v1153, 0.0
  %vm1332 = vcmp.gt.f32.partialorder %v1158, 0.0
  %vm1333 = vcmp.gt.f32.partialorder %v1161, 0.0
  %vm1334 = vcmp.gt.f32.partialorder %v1166, 0.0
  %vm1335 = vcmp.gt.f32.partialorder %v1169, 0.0
  %vm1336 = vcmp.gt.f32.partialorder %v1174, 0.0
  %vm1337 = vcmp.gt.f32.partialorder %v1177, 0.0
  %vm1338 = vcmp.gt.f32.partialorder %v1182, 0.0
  %vm1339 = vcmp.gt.f32.partialorder %v1185, 0.0
  %vm1340 = vcmp.gt.f32.partialorder %v1190, 0.0
  %vm1341 = vcmp.gt.f32.partialorder %v1193, 0.0
  %vm1342 = vcmp.gt.f32.partialorder %v1198, 0.0
  %vm1343 = vcmp.gt.f32.partialorder %v1201, 0.0
  %vm1344 = vcmp.gt.f32.partialorder %v1206, 0.0
  %vm1345 = vcmp.gt.f32.partialorder %v1209, 0.0
  %vm1346 = vcmp.gt.f32.partialorder %v1214, 0.0
  %vm1347 = vcmp.gt.f32.partialorder %v1217, 0.0
  %v1348 = vld [vmem:[%s2] sm:$0x1]
  %v1350 = vlaneseq
  %v1351 = vshrl.u32 %v1350, 7
  %v1352 = vsub.s32 0, %v1351
  %v1353 = vrot.slane %v1348, %v1352
  %v1355 = vmul.f32 %v1353, %v710
  %v1356 = vmul.f32 %v1353, %v713
  %v1357 = vmul.f32 %v1353, %v718
  %v1358 = vmul.f32 %v1353, %v721
  %v1359 = vmul.f32 %v1353, %v726
  %v1360 = vmul.f32 %v1353, %v729
  %v1361 = vmul.f32 %v1353, %v734
  %v1362 = vmul.f32 %v1353, %v737
  %v1363 = vmul.f32 %v1353, %v742
  %v1364 = vmul.f32 %v1353, %v745
  %v1365 = vmul.f32 %v1353, %v750
  %v1366 = vmul.f32 %v1353, %v753
  %v1367 = vmul.f32 %v1353, %v758
  %v1368 = vmul.f32 %v1353, %v761
  %v1369 = vmul.f32 %v1353, %v766
  %v1370 = vmul.f32 %v1353, %v769
  %v1371 = vmul.f32 %v1353, %v774
  %v1372 = vmul.f32 %v1353, %v777
  %v1373 = vmul.f32 %v1353, %v782
  %v1374 = vmul.f32 %v1353, %v785
  %v1375 = vmul.f32 %v1353, %v790
  %v1376 = vmul.f32 %v1353, %v793
  %v1377 = vmul.f32 %v1353, %v798
  %v1378 = vmul.f32 %v1353, %v801
  %v1379 = vmul.f32 %v1353, %v806
  %v1380 = vmul.f32 %v1353, %v809
  %v1381 = vmul.f32 %v1353, %v814
  %v1382 = vmul.f32 %v1353, %v817
  %v1383 = vmul.f32 %v1353, %v822
  %v1384 = vmul.f32 %v1353, %v825
  %v1385 = vmul.f32 %v1353, %v830
  %v1386 = vmul.f32 %v1353, %v833
  %v1387 = vmul.f32 %v1353, %v838
  %v1388 = vmul.f32 %v1353, %v841
  %v1389 = vmul.f32 %v1353, %v846
  %v1390 = vmul.f32 %v1353, %v849
  %v1391 = vmul.f32 %v1353, %v854
  %v1392 = vmul.f32 %v1353, %v857
  %v1393 = vmul.f32 %v1353, %v862
  %v1394 = vmul.f32 %v1353, %v865
  %v1395 = vmul.f32 %v1353, %v870
  %v1396 = vmul.f32 %v1353, %v873
  %v1397 = vmul.f32 %v1353, %v878
  %v1398 = vmul.f32 %v1353, %v881
  %v1399 = vmul.f32 %v1353, %v886
  %v1400 = vmul.f32 %v1353, %v889
  %v1401 = vmul.f32 %v1353, %v894
  %v1402 = vmul.f32 %v1353, %v897
  %v1403 = vmul.f32 %v1353, %v902
  %v1404 = vmul.f32 %v1353, %v905
  %v1405 = vmul.f32 %v1353, %v910
  %v1406 = vmul.f32 %v1353, %v913
  %v1407 = vmul.f32 %v1353, %v918
  %v1408 = vmul.f32 %v1353, %v921
  %v1409 = vmul.f32 %v1353, %v926
  %v1410 = vmul.f32 %v1353, %v929
  %v1411 = vmul.f32 %v1353, %v934
  %v1412 = vmul.f32 %v1353, %v937
  %v1413 = vmul.f32 %v1353, %v942
  %v1414 = vmul.f32 %v1353, %v945
  %v1415 = vmul.f32 %v1353, %v950
  %v1416 = vmul.f32 %v1353, %v953
  %v1417 = vmul.f32 %v1353, %v958
  %v1418 = vmul.f32 %v1353, %v961
  %v1419 = vmul.f32 %v1353, %v966
  %v1420 = vmul.f32 %v1353, %v969
  %v1421 = vmul.f32 %v1353, %v974
  %v1422 = vmul.f32 %v1353, %v977
  %v1423 = vmul.f32 %v1353, %v982
  %v1424 = vmul.f32 %v1353, %v985
  %v1425 = vmul.f32 %v1353, %v990
  %v1426 = vmul.f32 %v1353, %v993
  %v1427 = vmul.f32 %v1353, %v998
  %v1428 = vmul.f32 %v1353, %v1001
  %v1429 = vmul.f32 %v1353, %v1006
  %v1430 = vmul.f32 %v1353, %v1009
  %v1431 = vmul.f32 %v1353, %v1014
  %v1432 = vmul.f32 %v1353, %v1017
  %v1433 = vmul.f32 %v1353, %v1022
  %v1434 = vmul.f32 %v1353, %v1025
  %v1435 = vmul.f32 %v1353, %v1030
  %v1436 = vmul.f32 %v1353, %v1033
  %v1437 = vmul.f32 %v1353, %v1038
  %v1438 = vmul.f32 %v1353, %v1041
  %v1439 = vmul.f32 %v1353, %v1046
  %v1440 = vmul.f32 %v1353, %v1049
  %v1441 = vmul.f32 %v1353, %v1054
  %v1442 = vmul.f32 %v1353, %v1057
  %v1443 = vmul.f32 %v1353, %v1062
  %v1444 = vmul.f32 %v1353, %v1065
  %v1445 = vmul.f32 %v1353, %v1070
  %v1446 = vmul.f32 %v1353, %v1073
  %v1447 = vmul.f32 %v1353, %v1078
  %v1448 = vmul.f32 %v1353, %v1081
  %v1449 = vmul.f32 %v1353, %v1086
  %v1450 = vmul.f32 %v1353, %v1089
  %v1451 = vmul.f32 %v1353, %v1094
  %v1452 = vmul.f32 %v1353, %v1097
  %v1453 = vmul.f32 %v1353, %v1102
  %v1454 = vmul.f32 %v1353, %v1105
  %v1455 = vmul.f32 %v1353, %v1110
  %v1456 = vmul.f32 %v1353, %v1113
  %v1457 = vmul.f32 %v1353, %v1118
  %v1458 = vmul.f32 %v1353, %v1121
  %v1459 = vmul.f32 %v1353, %v1126
  %v1460 = vmul.f32 %v1353, %v1129
  %v1461 = vmul.f32 %v1353, %v1134
  %v1462 = vmul.f32 %v1353, %v1137
  %v1463 = vmul.f32 %v1353, %v1142
  %v1464 = vmul.f32 %v1353, %v1145
  %v1465 = vmul.f32 %v1353, %v1150
  %v1466 = vmul.f32 %v1353, %v1153
  %v1467 = vmul.f32 %v1353, %v1158
  %v1468 = vmul.f32 %v1353, %v1161
  %v1469 = vmul.f32 %v1353, %v1166
  %v1470 = vmul.f32 %v1353, %v1169
  %v1471 = vmul.f32 %v1353, %v1174
  %v1472 = vmul.f32 %v1353, %v1177
  %v1473 = vmul.f32 %v1353, %v1182
  %v1474 = vmul.f32 %v1353, %v1185
  %v1475 = vmul.f32 %v1353, %v1190
  %v1476 = vmul.f32 %v1353, %v1193
  %v1477 = vmul.f32 %v1353, %v1198
  %v1478 = vmul.f32 %v1353, %v1201
  %v1479 = vmul.f32 %v1353, %v1206
  %v1480 = vmul.f32 %v1353, %v1209
  %v1481 = vmul.f32 %v1353, %v1214
  %v1482 = vmul.f32 %v1353, %v1217
  %v1483 = vsel %vm1220, %v710, %v1355
  %v1484 = vsel %vm1221, %v713, %v1356
  %v1485 = vsel %vm1222, %v718, %v1357
  %v1486 = vsel %vm1223, %v721, %v1358
  %v1487 = vsel %vm1224, %v726, %v1359
  %v1488 = vsel %vm1225, %v729, %v1360
  %v1489 = vsel %vm1226, %v734, %v1361
  %v1490 = vsel %vm1227, %v737, %v1362
  %v1491 = vsel %vm1228, %v742, %v1363
  %v1492 = vsel %vm1229, %v745, %v1364
  %v1493 = vsel %vm1230, %v750, %v1365
  %v1494 = vsel %vm1231, %v753, %v1366
  %v1495 = vsel %vm1232, %v758, %v1367
  %v1496 = vsel %vm1233, %v761, %v1368
  %v1497 = vsel %vm1234, %v766, %v1369
  %v1498 = vsel %vm1235, %v769, %v1370
  %v1499 = vsel %vm1236, %v774, %v1371
  %v1500 = vsel %vm1237, %v777, %v1372
  %v1501 = vsel %vm1238, %v782, %v1373
  %v1502 = vsel %vm1239, %v785, %v1374
  %v1503 = vsel %vm1240, %v790, %v1375
  %v1504 = vsel %vm1241, %v793, %v1376
  %v1505 = vsel %vm1242, %v798, %v1377
  %v1506 = vsel %vm1243, %v801, %v1378
  %v1507 = vsel %vm1244, %v806, %v1379
  %v1508 = vsel %vm1245, %v809, %v1380
  %v1509 = vsel %vm1246, %v814, %v1381
  %v1510 = vsel %vm1247, %v817, %v1382
  %v1511 = vsel %vm1248, %v822, %v1383
  %v1512 = vsel %vm1249, %v825, %v1384
  %v1513 = vsel %vm1250, %v830, %v1385
  %v1514 = vsel %vm1251, %v833, %v1386
  %v1515 = vsel %vm1252, %v838, %v1387
  %v1516 = vsel %vm1253, %v841, %v1388
  %v1517 = vsel %vm1254, %v846, %v1389
  %v1518 = vsel %vm1255, %v849, %v1390
  %v1519 = vsel %vm1256, %v854, %v1391
  %v1520 = vsel %vm1257, %v857, %v1392
  %v1521 = vsel %vm1258, %v862, %v1393
  %v1522 = vsel %vm1259, %v865, %v1394
  %v1523 = vsel %vm1260, %v870, %v1395
  %v1524 = vsel %vm1261, %v873, %v1396
  %v1525 = vsel %vm1262, %v878, %v1397
  %v1526 = vsel %vm1263, %v881, %v1398
  %v1527 = vsel %vm1264, %v886, %v1399
  %v1528 = vsel %vm1265, %v889, %v1400
  %v1529 = vsel %vm1266, %v894, %v1401
  %v1530 = vsel %vm1267, %v897, %v1402
  %v1531 = vsel %vm1268, %v902, %v1403
  %v1532 = vsel %vm1269, %v905, %v1404
  %v1533 = vsel %vm1270, %v910, %v1405
  %v1534 = vsel %vm1271, %v913, %v1406
  %v1535 = vsel %vm1272, %v918, %v1407
  %v1536 = vsel %vm1273, %v921, %v1408
  %v1537 = vsel %vm1274, %v926, %v1409
  %v1538 = vsel %vm1275, %v929, %v1410
  %v1539 = vsel %vm1276, %v934, %v1411
  %v1540 = vsel %vm1277, %v937, %v1412
  %v1541 = vsel %vm1278, %v942, %v1413
  %v1542 = vsel %vm1279, %v945, %v1414
  %v1543 = vsel %vm1280, %v950, %v1415
  %v1544 = vsel %vm1281, %v953, %v1416
  %v1545 = vsel %vm1282, %v958, %v1417
  %v1546 = vsel %vm1283, %v961, %v1418
  %v1547 = vsel %vm1284, %v966, %v1419
  %v1548 = vsel %vm1285, %v969, %v1420
  %v1549 = vsel %vm1286, %v974, %v1421
  %v1550 = vsel %vm1287, %v977, %v1422
  %v1551 = vsel %vm1288, %v982, %v1423
  %v1552 = vsel %vm1289, %v985, %v1424
  %v1553 = vsel %vm1290, %v990, %v1425
  %v1554 = vsel %vm1291, %v993, %v1426
  %v1555 = vsel %vm1292, %v998, %v1427
  %v1556 = vsel %vm1293, %v1001, %v1428
  %v1557 = vsel %vm1294, %v1006, %v1429
  %v1558 = vsel %vm1295, %v1009, %v1430
  %v1559 = vsel %vm1296, %v1014, %v1431
  %v1560 = vsel %vm1297, %v1017, %v1432
  %v1561 = vsel %vm1298, %v1022, %v1433
  %v1562 = vsel %vm1299, %v1025, %v1434
  %v1563 = vsel %vm1300, %v1030, %v1435
  %v1564 = vsel %vm1301, %v1033, %v1436
  %v1565 = vsel %vm1302, %v1038, %v1437
  %v1566 = vsel %vm1303, %v1041, %v1438
  %v1567 = vsel %vm1304, %v1046, %v1439
  %v1568 = vsel %vm1305, %v1049, %v1440
  %v1569 = vsel %vm1306, %v1054, %v1441
  %v1570 = vsel %vm1307, %v1057, %v1442
  %v1571 = vsel %vm1308, %v1062, %v1443
  %v1572 = vsel %vm1309, %v1065, %v1444
  %v1573 = vsel %vm1310, %v1070, %v1445
  %v1574 = vsel %vm1311, %v1073, %v1446
  %v1575 = vsel %vm1312, %v1078, %v1447
  %v1576 = vsel %vm1313, %v1081, %v1448
  %v1577 = vsel %vm1314, %v1086, %v1449
  %v1578 = vsel %vm1315, %v1089, %v1450
  %v1579 = vsel %vm1316, %v1094, %v1451
  %v1580 = vsel %vm1317, %v1097, %v1452
  %v1581 = vsel %vm1318, %v1102, %v1453
  %v1582 = vsel %vm1319, %v1105, %v1454
  %v1583 = vsel %vm1320, %v1110, %v1455
  %v1584 = vsel %vm1321, %v1113, %v1456
  %v1585 = vsel %vm1322, %v1118, %v1457
  %v1586 = vsel %vm1323, %v1121, %v1458
  %v1587 = vsel %vm1324, %v1126, %v1459
  %v1588 = vsel %vm1325, %v1129, %v1460
  %v1589 = vsel %vm1326, %v1134, %v1461
  %v1590 = vsel %vm1327, %v1137, %v1462
  %v1591 = vsel %vm1328, %v1142, %v1463
  %v1592 = vsel %vm1329, %v1145, %v1464
  %v1593 = vsel %vm1330, %v1150, %v1465
  %v1594 = vsel %vm1331, %v1153, %v1466
  %v1595 = vsel %vm1332, %v1158, %v1467
  %v1596 = vsel %vm1333, %v1161, %v1468
  %v1597 = vsel %vm1334, %v1166, %v1469
  %v1598 = vsel %vm1335, %v1169, %v1470
  %v1599 = vsel %vm1336, %v1174, %v1471
  %v1600 = vsel %vm1337, %v1177, %v1472
  %v1601 = vsel %vm1338, %v1182, %v1473
  %v1602 = vsel %vm1339, %v1185, %v1474
  %v1603 = vsel %vm1340, %v1190, %v1475
  %v1604 = vsel %vm1341, %v1193, %v1476
  %v1605 = vsel %vm1342, %v1198, %v1477
  %v1606 = vsel %vm1343, %v1201, %v1478
  %v1607 = vsel %vm1344, %v1206, %v1479
  %v1608 = vsel %vm1345, %v1209, %v1480
  %v1609 = vsel %vm1346, %v1214, %v1481
  %v1610 = vsel %vm1347, %v1217, %v1482
  %v1611 = vpack.c.bf16 %v1484, %v1483
  %v1612 = vpack.c.bf16 %v1486, %v1485
  %v1613 = vpack.c.bf16 %v1488, %v1487
  %v1614 = vpack.c.bf16 %v1490, %v1489
  %v1615 = vpack.c.bf16 %v1492, %v1491
  %v1616 = vpack.c.bf16 %v1494, %v1493
  %v1617 = vpack.c.bf16 %v1496, %v1495
  %v1618 = vpack.c.bf16 %v1498, %v1497
  %v1619 = vpack.c.bf16 %v1500, %v1499
  %v1620 = vpack.c.bf16 %v1502, %v1501
  %v1621 = vpack.c.bf16 %v1504, %v1503
  %v1622 = vpack.c.bf16 %v1506, %v1505
  %v1623 = vpack.c.bf16 %v1508, %v1507
  %v1624 = vpack.c.bf16 %v1510, %v1509
  %v1625 = vpack.c.bf16 %v1512, %v1511
  %v1626 = vpack.c.bf16 %v1514, %v1513
  %v1627 = vpack.c.bf16 %v1516, %v1515
  %v1628 = vpack.c.bf16 %v1518, %v1517
  %v1629 = vpack.c.bf16 %v1520, %v1519
  %v1630 = vpack.c.bf16 %v1522, %v1521
  %v1631 = vpack.c.bf16 %v1524, %v1523
  %v1632 = vpack.c.bf16 %v1526, %v1525
  %v1633 = vpack.c.bf16 %v1528, %v1527
  %v1634 = vpack.c.bf16 %v1530, %v1529
  %v1635 = vpack.c.bf16 %v1532, %v1531
  %v1636 = vpack.c.bf16 %v1534, %v1533
  %v1637 = vpack.c.bf16 %v1536, %v1535
  %v1638 = vpack.c.bf16 %v1538, %v1537
  %v1639 = vpack.c.bf16 %v1540, %v1539
  %v1640 = vpack.c.bf16 %v1542, %v1541
  %v1641 = vpack.c.bf16 %v1544, %v1543
  %v1642 = vpack.c.bf16 %v1546, %v1545
  %v1643 = vpack.c.bf16 %v1548, %v1547
  %v1644 = vpack.c.bf16 %v1550, %v1549
  %v1645 = vpack.c.bf16 %v1552, %v1551
  %v1646 = vpack.c.bf16 %v1554, %v1553
  %v1647 = vpack.c.bf16 %v1556, %v1555
  %v1648 = vpack.c.bf16 %v1558, %v1557
  %v1649 = vpack.c.bf16 %v1560, %v1559
  %v1650 = vpack.c.bf16 %v1562, %v1561
  %v1651 = vpack.c.bf16 %v1564, %v1563
  %v1652 = vpack.c.bf16 %v1566, %v1565
  %v1653 = vpack.c.bf16 %v1568, %v1567
  %v1654 = vpack.c.bf16 %v1570, %v1569
  %v1655 = vpack.c.bf16 %v1572, %v1571
  %v1656 = vpack.c.bf16 %v1574, %v1573
  %v1657 = vpack.c.bf16 %v1576, %v1575
  %v1658 = vpack.c.bf16 %v1578, %v1577
  %v1659 = vpack.c.bf16 %v1580, %v1579
  %v1660 = vpack.c.bf16 %v1582, %v1581
  %v1661 = vpack.c.bf16 %v1584, %v1583
  %v1662 = vpack.c.bf16 %v1586, %v1585
  %v1663 = vpack.c.bf16 %v1588, %v1587
  %v1664 = vpack.c.bf16 %v1590, %v1589
  %v1665 = vpack.c.bf16 %v1592, %v1591
  %v1666 = vpack.c.bf16 %v1594, %v1593
  %v1667 = vpack.c.bf16 %v1596, %v1595
  %v1668 = vpack.c.bf16 %v1598, %v1597
  %v1669 = vpack.c.bf16 %v1600, %v1599
  %v1670 = vpack.c.bf16 %v1602, %v1601
  %v1671 = vpack.c.bf16 %v1604, %v1603
  %v1672 = vpack.c.bf16 %v1606, %v1605
  %v1673 = vpack.c.bf16 %v1608, %v1607
  %v1674 = vpack.c.bf16 %v1610, %v1609
  %v1739 = vunpack.c.l.b16 %v1611
  %v1740 = vunpack.c.h.b16 %v1611
  %v1741 = vunpack.c.l.b16 %v1612
  %v1742 = vunpack.c.h.b16 %v1612
  %v1743 = vunpack.c.l.b16 %v1613
  %v1744 = vunpack.c.h.b16 %v1613
  %v1745 = vunpack.c.l.b16 %v1614
  %v1746 = vunpack.c.h.b16 %v1614
  %v1747 = vunpack.c.l.b16 %v1615
  %v1748 = vunpack.c.h.b16 %v1615
  %v1749 = vunpack.c.l.b16 %v1616
  %v1750 = vunpack.c.h.b16 %v1616
  %v1751 = vunpack.c.l.b16 %v1617
  %v1752 = vunpack.c.h.b16 %v1617
  %v1753 = vunpack.c.l.b16 %v1618
  %v1754 = vunpack.c.h.b16 %v1618
  %v1755 = vunpack.c.l.b16 %v1619
  %v1756 = vunpack.c.h.b16 %v1619
  %v1757 = vunpack.c.l.b16 %v1620
  %v1758 = vunpack.c.h.b16 %v1620
  %v1759 = vunpack.c.l.b16 %v1621
  %v1760 = vunpack.c.h.b16 %v1621
  %v1761 = vunpack.c.l.b16 %v1622
  %v1762 = vunpack.c.h.b16 %v1622
  %v1763 = vunpack.c.l.b16 %v1623
  %v1764 = vunpack.c.h.b16 %v1623
  %v1765 = vunpack.c.l.b16 %v1624
  %v1766 = vunpack.c.h.b16 %v1624
  %v1767 = vunpack.c.l.b16 %v1625
  %v1768 = vunpack.c.h.b16 %v1625
  %v1769 = vunpack.c.l.b16 %v1626
  %v1770 = vunpack.c.h.b16 %v1626
  %v1771 = vunpack.c.l.b16 %v1627
  %v1772 = vunpack.c.h.b16 %v1627
  %v1773 = vunpack.c.l.b16 %v1628
  %v1774 = vunpack.c.h.b16 %v1628
  %v1775 = vunpack.c.l.b16 %v1629
  %v1776 = vunpack.c.h.b16 %v1629
  %v1777 = vunpack.c.l.b16 %v1630
  %v1778 = vunpack.c.h.b16 %v1630
  %v1779 = vunpack.c.l.b16 %v1631
  %v1780 = vunpack.c.h.b16 %v1631
  %v1781 = vunpack.c.l.b16 %v1632
  %v1782 = vunpack.c.h.b16 %v1632
  %v1783 = vunpack.c.l.b16 %v1633
  %v1784 = vunpack.c.h.b16 %v1633
  %v1785 = vunpack.c.l.b16 %v1634
  %v1786 = vunpack.c.h.b16 %v1634
  %v1787 = vunpack.c.l.b16 %v1635
  %v1788 = vunpack.c.h.b16 %v1635
  %v1789 = vunpack.c.l.b16 %v1636
  %v1790 = vunpack.c.h.b16 %v1636
  %v1791 = vunpack.c.l.b16 %v1637
  %v1792 = vunpack.c.h.b16 %v1637
  %v1793 = vunpack.c.l.b16 %v1638
  %v1794 = vunpack.c.h.b16 %v1638
  %v1795 = vunpack.c.l.b16 %v1639
  %v1796 = vunpack.c.h.b16 %v1639
  %v1797 = vunpack.c.l.b16 %v1640
  %v1798 = vunpack.c.h.b16 %v1640
  %v1799 = vunpack.c.l.b16 %v1641
  %v1800 = vunpack.c.h.b16 %v1641
  %v1801 = vunpack.c.l.b16 %v1642
  %v1802 = vunpack.c.h.b16 %v1642
  %v1803 = vunpack.c.l.b16 %v1643
  %v1804 = vunpack.c.h.b16 %v1643
  %v1805 = vunpack.c.l.b16 %v1644
  %v1806 = vunpack.c.h.b16 %v1644
  %v1807 = vunpack.c.l.b16 %v1645
  %v1808 = vunpack.c.h.b16 %v1645
  %v1809 = vunpack.c.l.b16 %v1646
  %v1810 = vunpack.c.h.b16 %v1646
  %v1811 = vunpack.c.l.b16 %v1647
  %v1812 = vunpack.c.h.b16 %v1647
  %v1813 = vunpack.c.l.b16 %v1648
  %v1814 = vunpack.c.h.b16 %v1648
  %v1815 = vunpack.c.l.b16 %v1649
  %v1816 = vunpack.c.h.b16 %v1649
  %v1817 = vunpack.c.l.b16 %v1650
  %v1818 = vunpack.c.h.b16 %v1650
  %v1819 = vunpack.c.l.b16 %v1651
  %v1820 = vunpack.c.h.b16 %v1651
  %v1821 = vunpack.c.l.b16 %v1652
  %v1822 = vunpack.c.h.b16 %v1652
  %v1823 = vunpack.c.l.b16 %v1653
  %v1824 = vunpack.c.h.b16 %v1653
  %v1825 = vunpack.c.l.b16 %v1654
  %v1826 = vunpack.c.h.b16 %v1654
  %v1827 = vunpack.c.l.b16 %v1655
  %v1828 = vunpack.c.h.b16 %v1655
  %v1829 = vunpack.c.l.b16 %v1656
  %v1830 = vunpack.c.h.b16 %v1656
  %v1831 = vunpack.c.l.b16 %v1657
  %v1832 = vunpack.c.h.b16 %v1657
  %v1833 = vunpack.c.l.b16 %v1658
  %v1834 = vunpack.c.h.b16 %v1658
  %v1835 = vunpack.c.l.b16 %v1659
  %v1836 = vunpack.c.h.b16 %v1659
  %v1837 = vunpack.c.l.b16 %v1660
  %v1838 = vunpack.c.h.b16 %v1660
  %v1839 = vunpack.c.l.b16 %v1661
  %v1840 = vunpack.c.h.b16 %v1661
  %v1841 = vunpack.c.l.b16 %v1662
  %v1842 = vunpack.c.h.b16 %v1662
  %v1843 = vunpack.c.l.b16 %v1663
  %v1844 = vunpack.c.h.b16 %v1663
  %v1845 = vunpack.c.l.b16 %v1664
  %v1846 = vunpack.c.h.b16 %v1664
  %v1847 = vunpack.c.l.b16 %v1665
  %v1848 = vunpack.c.h.b16 %v1665
  %v1849 = vunpack.c.l.b16 %v1666
  %v1850 = vunpack.c.h.b16 %v1666
  %v1851 = vunpack.c.l.b16 %v1667
  %v1852 = vunpack.c.h.b16 %v1667
  %v1853 = vunpack.c.l.b16 %v1668
  %v1854 = vunpack.c.h.b16 %v1668
  %v1855 = vunpack.c.l.b16 %v1669
  %v1856 = vunpack.c.h.b16 %v1669
  %v1857 = vunpack.c.l.b16 %v1670
  %v1858 = vunpack.c.h.b16 %v1670
  %v1859 = vunpack.c.l.b16 %v1671
  %v1860 = vunpack.c.h.b16 %v1671
  %v1861 = vunpack.c.l.b16 %v1672
  %v1862 = vunpack.c.h.b16 %v1672
  %v1863 = vunpack.c.l.b16 %v1673
  %v1864 = vunpack.c.h.b16 %v1673
  %v1865 = vunpack.c.l.b16 %v1674
  %v1866 = vunpack.c.h.b16 %v1674
  %v1867 = vpack.c.b16 %v1739, %v1739
  %v1868 = vpack.c.b16 %v1740, %v1740
  %v1869 = vpack.c.b16 %v1741, %v1741
  %v1870 = vpack.c.b16 %v1742, %v1742
  %v1871 = vpack.c.b16 %v1743, %v1743
  %v1872 = vpack.c.b16 %v1744, %v1744
  %v1873 = vpack.c.b16 %v1745, %v1745
  %v1874 = vpack.c.b16 %v1746, %v1746
  %v1875 = vpack.c.b16 %v1747, %v1747
  %v1876 = vpack.c.b16 %v1748, %v1748
  %v1877 = vpack.c.b16 %v1749, %v1749
  %v1878 = vpack.c.b16 %v1750, %v1750
  %v1879 = vpack.c.b16 %v1751, %v1751
  %v1880 = vpack.c.b16 %v1752, %v1752
  %v1881 = vpack.c.b16 %v1753, %v1753
  %v1882 = vpack.c.b16 %v1754, %v1754
  %v1883 = vpack.c.b16 %v1755, %v1755
  %v1884 = vpack.c.b16 %v1756, %v1756
  %v1885 = vpack.c.b16 %v1757, %v1757
  %v1886 = vpack.c.b16 %v1758, %v1758
  %v1887 = vpack.c.b16 %v1759, %v1759
  %v1888 = vpack.c.b16 %v1760, %v1760
  %v1889 = vpack.c.b16 %v1761, %v1761
  %v1890 = vpack.c.b16 %v1762, %v1762
  %v1891 = vpack.c.b16 %v1763, %v1763
  %v1892 = vpack.c.b16 %v1764, %v1764
  %v1893 = vpack.c.b16 %v1765, %v1765
  %v1894 = vpack.c.b16 %v1766, %v1766
  %v1895 = vpack.c.b16 %v1767, %v1767
  %v1896 = vpack.c.b16 %v1768, %v1768
  %v1897 = vpack.c.b16 %v1769, %v1769
  %v1898 = vpack.c.b16 %v1770, %v1770
  %v1899 = vpack.c.b16 %v1771, %v1771
  %v1900 = vpack.c.b16 %v1772, %v1772
  %v1901 = vpack.c.b16 %v1773, %v1773
  %v1902 = vpack.c.b16 %v1774, %v1774
  %v1903 = vpack.c.b16 %v1775, %v1775
  %v1904 = vpack.c.b16 %v1776, %v1776
  %v1905 = vpack.c.b16 %v1777, %v1777
  %v1906 = vpack.c.b16 %v1778, %v1778
  %v1907 = vpack.c.b16 %v1779, %v1779
  %v1908 = vpack.c.b16 %v1780, %v1780
  %v1909 = vpack.c.b16 %v1781, %v1781
  %v1910 = vpack.c.b16 %v1782, %v1782
  %v1911 = vpack.c.b16 %v1783, %v1783
  %v1912 = vpack.c.b16 %v1784, %v1784
  %v1913 = vpack.c.b16 %v1785, %v1785
  %v1914 = vpack.c.b16 %v1786, %v1786
  %v1915 = vpack.c.b16 %v1787, %v1787
  %v1916 = vpack.c.b16 %v1788, %v1788
  %v1917 = vpack.c.b16 %v1789, %v1789
  %v1918 = vpack.c.b16 %v1790, %v1790
  %v1919 = vpack.c.b16 %v1791, %v1791
  %v1920 = vpack.c.b16 %v1792, %v1792
  %v1921 = vpack.c.b16 %v1793, %v1793
  %v1922 = vpack.c.b16 %v1794, %v1794
  %v1923 = vpack.c.b16 %v1795, %v1795
  %v1924 = vpack.c.b16 %v1796, %v1796
  %v1925 = vpack.c.b16 %v1797, %v1797
  %v1926 = vpack.c.b16 %v1798, %v1798
  %v1927 = vpack.c.b16 %v1799, %v1799
  %v1928 = vpack.c.b16 %v1800, %v1800
  %v1929 = vpack.c.b16 %v1801, %v1801
  %v1930 = vpack.c.b16 %v1802, %v1802
  %v1931 = vpack.c.b16 %v1803, %v1803
  %v1932 = vpack.c.b16 %v1804, %v1804
  %v1933 = vpack.c.b16 %v1805, %v1805
  %v1934 = vpack.c.b16 %v1806, %v1806
  %v1935 = vpack.c.b16 %v1807, %v1807
  %v1936 = vpack.c.b16 %v1808, %v1808
  %v1937 = vpack.c.b16 %v1809, %v1809
  %v1938 = vpack.c.b16 %v1810, %v1810
  %v1939 = vpack.c.b16 %v1811, %v1811
  %v1940 = vpack.c.b16 %v1812, %v1812
  %v1941 = vpack.c.b16 %v1813, %v1813
  %v1942 = vpack.c.b16 %v1814, %v1814
  %v1943 = vpack.c.b16 %v1815, %v1815
  %v1944 = vpack.c.b16 %v1816, %v1816
  %v1945 = vpack.c.b16 %v1817, %v1817
  %v1946 = vpack.c.b16 %v1818, %v1818
  %v1947 = vpack.c.b16 %v1819, %v1819
  %v1948 = vpack.c.b16 %v1820, %v1820
  %v1949 = vpack.c.b16 %v1821, %v1821
  %v1950 = vpack.c.b16 %v1822, %v1822
  %v1951 = vpack.c.b16 %v1823, %v1823
  %v1952 = vpack.c.b16 %v1824, %v1824
  %v1953 = vpack.c.b16 %v1825, %v1825
  %v1954 = vpack.c.b16 %v1826, %v1826
  %v1955 = vpack.c.b16 %v1827, %v1827
  %v1956 = vpack.c.b16 %v1828, %v1828
  %v1957 = vpack.c.b16 %v1829, %v1829
  %v1958 = vpack.c.b16 %v1830, %v1830
  %v1959 = vpack.c.b16 %v1831, %v1831
  %v1960 = vpack.c.b16 %v1832, %v1832
  %v1961 = vpack.c.b16 %v1833, %v1833
  %v1962 = vpack.c.b16 %v1834, %v1834
  %v1963 = vpack.c.b16 %v1835, %v1835
  %v1964 = vpack.c.b16 %v1836, %v1836
  %v1965 = vpack.c.b16 %v1837, %v1837
  %v1966 = vpack.c.b16 %v1838, %v1838
  %v1967 = vpack.c.b16 %v1839, %v1839
  %v1968 = vpack.c.b16 %v1840, %v1840
  %v1969 = vpack.c.b16 %v1841, %v1841
  %v1970 = vpack.c.b16 %v1842, %v1842
  %v1971 = vpack.c.b16 %v1843, %v1843
  %v1972 = vpack.c.b16 %v1844, %v1844
  %v1973 = vpack.c.b16 %v1845, %v1845
  %v1974 = vpack.c.b16 %v1846, %v1846
  %v1975 = vpack.c.b16 %v1847, %v1847
  %v1976 = vpack.c.b16 %v1848, %v1848
  %v1977 = vpack.c.b16 %v1849, %v1849
  %v1978 = vpack.c.b16 %v1850, %v1850
  %v1979 = vpack.c.b16 %v1851, %v1851
  %v1980 = vpack.c.b16 %v1852, %v1852
  %v1981 = vpack.c.b16 %v1853, %v1853
  %v1982 = vpack.c.b16 %v1854, %v1854
  %v1983 = vpack.c.b16 %v1855, %v1855
  %v1984 = vpack.c.b16 %v1856, %v1856
  %v1985 = vpack.c.b16 %v1857, %v1857
  %v1986 = vpack.c.b16 %v1858, %v1858
  %v1987 = vpack.c.b16 %v1859, %v1859
  %v1988 = vpack.c.b16 %v1860, %v1860
  %v1989 = vpack.c.b16 %v1861, %v1861
  %v1990 = vpack.c.b16 %v1862, %v1862
  %v1991 = vpack.c.b16 %v1863, %v1863
  %v1992 = vpack.c.b16 %v1864, %v1864
  %v1993 = vpack.c.b16 %v1865, %v1865
  %v1994 = vpack.c.b16 %v1866, %v1866
  %vm2123 = vcmask 60416
  %2124 = vst.msk [vmem:[%s3] sm:$0xf] %vm2123, %v1867
  %2125 = vst.msk [vmem:[%s3 + $0x4] sm:$0xf] %vm2123, %v1868
  %2126 = vst.msk [vmem:[%s3 + $0x8] sm:$0xf] %vm2123, %v1869
  %2127 = vst.msk [vmem:[%s3 + $0xc] sm:$0xf] %vm2123, %v1870
  %2128 = vst.msk [vmem:[%s3 + $0x10] sm:$0xf] %vm2123, %v1871
  %2129 = vst.msk [vmem:[%s3 + $0x14] sm:$0xf] %vm2123, %v1872
  %2130 = vst.msk [vmem:[%s3 + $0x18] sm:$0xf] %vm2123, %v1873
  %2131 = vst.msk [vmem:[%s3 + $0x1c] sm:$0xf] %vm2123, %v1874
  %2132 = vst.msk [vmem:[%s3 + $0x20] sm:$0xf] %vm2123, %v1875
  %2133 = vst.msk [vmem:[%s3 + $0x24] sm:$0xf] %vm2123, %v1876
  %2134 = vst.msk [vmem:[%s3 + $0x28] sm:$0xf] %vm2123, %v1877
  %2135 = vst.msk [vmem:[%s3 + $0x2c] sm:$0xf] %vm2123, %v1878
  %2136 = vst.msk [vmem:[%s3 + $0x30] sm:$0xf] %vm2123, %v1879
  %2137 = vst.msk [vmem:[%s3 + $0x34] sm:$0xf] %vm2123, %v1880
  %2138 = vst.msk [vmem:[%s3 + $0x38] sm:$0xf] %vm2123, %v1881
  %2139 = vst.msk [vmem:[%s3 + $0x3c] sm:$0xf] %vm2123, %v1882
  %2140 = vst.msk [vmem:[%s3 + $0x40] sm:$0xf] %vm2123, %v1883
  %2141 = vst.msk [vmem:[%s3 + $0x44] sm:$0xf] %vm2123, %v1884
  %2142 = vst.msk [vmem:[%s3 + $0x48] sm:$0xf] %vm2123, %v1885
  %2143 = vst.msk [vmem:[%s3 + $0x4c] sm:$0xf] %vm2123, %v1886
  %2144 = vst.msk [vmem:[%s3 + $0x50] sm:$0xf] %vm2123, %v1887
  %2145 = vst.msk [vmem:[%s3 + $0x54] sm:$0xf] %vm2123, %v1888
  %2146 = vst.msk [vmem:[%s3 + $0x58] sm:$0xf] %vm2123, %v1889
  %2147 = vst.msk [vmem:[%s3 + $0x5c] sm:$0xf] %vm2123, %v1890
  %2148 = vst.msk [vmem:[%s3 + $0x60] sm:$0xf] %vm2123, %v1891
  %2149 = vst.msk [vmem:[%s3 + $0x64] sm:$0xf] %vm2123, %v1892
  %2150 = vst.msk [vmem:[%s3 + $0x68] sm:$0xf] %vm2123, %v1893
  %2151 = vst.msk [vmem:[%s3 + $0x6c] sm:$0xf] %vm2123, %v1894
  %2152 = vst.msk [vmem:[%s3 + $0x70] sm:$0xf] %vm2123, %v1895
  %2153 = vst.msk [vmem:[%s3 + $0x74] sm:$0xf] %vm2123, %v1896
  %2154 = vst.msk [vmem:[%s3 + $0x78] sm:$0xf] %vm2123, %v1897
  %2155 = vst.msk [vmem:[%s3 + $0x7c] sm:$0xf] %vm2123, %v1898
  %2156 = vst.msk [vmem:[%s3 + $0x80] sm:$0xf] %vm2123, %v1899
  %2157 = vst.msk [vmem:[%s3 + $0x84] sm:$0xf] %vm2123, %v1900
  %2158 = vst.msk [vmem:[%s3 + $0x88] sm:$0xf] %vm2123, %v1901
  %2159 = vst.msk [vmem:[%s3 + $0x8c] sm:$0xf] %vm2123, %v1902
  %2160 = vst.msk [vmem:[%s3 + $0x90] sm:$0xf] %vm2123, %v1903
  %2161 = vst.msk [vmem:[%s3 + $0x94] sm:$0xf] %vm2123, %v1904
  %2162 = vst.msk [vmem:[%s3 + $0x98] sm:$0xf] %vm2123, %v1905
  %2163 = vst.msk [vmem:[%s3 + $0x9c] sm:$0xf] %vm2123, %v1906
  %2164 = vst.msk [vmem:[%s3 + $0xa0] sm:$0xf] %vm2123, %v1907
  %2165 = vst.msk [vmem:[%s3 + $0xa4] sm:$0xf] %vm2123, %v1908
  %2166 = vst.msk [vmem:[%s3 + $0xa8] sm:$0xf] %vm2123, %v1909
  %2167 = vst.msk [vmem:[%s3 + $0xac] sm:$0xf] %vm2123, %v1910
  %2168 = vst.msk [vmem:[%s3 + $0xb0] sm:$0xf] %vm2123, %v1911
  %2169 = vst.msk [vmem:[%s3 + $0xb4] sm:$0xf] %vm2123, %v1912
  %2170 = vst.msk [vmem:[%s3 + $0xb8] sm:$0xf] %vm2123, %v1913
  %2171 = vst.msk [vmem:[%s3 + $0xbc] sm:$0xf] %vm2123, %v1914
  %2172 = vst.msk [vmem:[%s3 + $0xc0] sm:$0xf] %vm2123, %v1915
  %2173 = vst.msk [vmem:[%s3 + $0xc4] sm:$0xf] %vm2123, %v1916
  %2174 = vst.msk [vmem:[%s3 + $0xc8] sm:$0xf] %vm2123, %v1917
  %2175 = vst.msk [vmem:[%s3 + $0xcc] sm:$0xf] %vm2123, %v1918
  %2176 = vst.msk [vmem:[%s3 + $0xd0] sm:$0xf] %vm2123, %v1919
  %2177 = vst.msk [vmem:[%s3 + $0xd4] sm:$0xf] %vm2123, %v1920
  %2178 = vst.msk [vmem:[%s3 + $0xd8] sm:$0xf] %vm2123, %v1921
  %2179 = vst.msk [vmem:[%s3 + $0xdc] sm:$0xf] %vm2123, %v1922
  %2180 = vst.msk [vmem:[%s3 + $0xe0] sm:$0xf] %vm2123, %v1923
  %2181 = vst.msk [vmem:[%s3 + $0xe4] sm:$0xf] %vm2123, %v1924
  %2182 = vst.msk [vmem:[%s3 + $0xe8] sm:$0xf] %vm2123, %v1925
  %2183 = vst.msk [vmem:[%s3 + $0xec] sm:$0xf] %vm2123, %v1926
  %2184 = vst.msk [vmem:[%s3 + $0xf0] sm:$0xf] %vm2123, %v1927
  %2185 = vst.msk [vmem:[%s3 + $0xf4] sm:$0xf] %vm2123, %v1928
  %2186 = vst.msk [vmem:[%s3 + $0xf8] sm:$0xf] %vm2123, %v1929
  %2187 = vst.msk [vmem:[%s3 + $0xfc] sm:$0xf] %vm2123, %v1930
  %2188 = vst.msk [vmem:[%s3 + $0x100] sm:$0xf] %vm2123, %v1931
  %2189 = vst.msk [vmem:[%s3 + $0x104] sm:$0xf] %vm2123, %v1932
  %2190 = vst.msk [vmem:[%s3 + $0x108] sm:$0xf] %vm2123, %v1933
  %2191 = vst.msk [vmem:[%s3 + $0x10c] sm:$0xf] %vm2123, %v1934
  %2192 = vst.msk [vmem:[%s3 + $0x110] sm:$0xf] %vm2123, %v1935
  %2193 = vst.msk [vmem:[%s3 + $0x114] sm:$0xf] %vm2123, %v1936
  %2194 = vst.msk [vmem:[%s3 + $0x118] sm:$0xf] %vm2123, %v1937
  %2195 = vst.msk [vmem:[%s3 + $0x11c] sm:$0xf] %vm2123, %v1938
  %2196 = vst.msk [vmem:[%s3 + $0x120] sm:$0xf] %vm2123, %v1939
  %2197 = vst.msk [vmem:[%s3 + $0x124] sm:$0xf] %vm2123, %v1940
  %2198 = vst.msk [vmem:[%s3 + $0x128] sm:$0xf] %vm2123, %v1941
  %2199 = vst.msk [vmem:[%s3 + $0x12c] sm:$0xf] %vm2123, %v1942
  %2200 = vst.msk [vmem:[%s3 + $0x130] sm:$0xf] %vm2123, %v1943
  %2201 = vst.msk [vmem:[%s3 + $0x134] sm:$0xf] %vm2123, %v1944
  %2202 = vst.msk [vmem:[%s3 + $0x138] sm:$0xf] %vm2123, %v1945
  %2203 = vst.msk [vmem:[%s3 + $0x13c] sm:$0xf] %vm2123, %v1946
  %2204 = vst.msk [vmem:[%s3 + $0x140] sm:$0xf] %vm2123, %v1947
  %2205 = vst.msk [vmem:[%s3 + $0x144] sm:$0xf] %vm2123, %v1948
  %2206 = vst.msk [vmem:[%s3 + $0x148] sm:$0xf] %vm2123, %v1949
  %2207 = vst.msk [vmem:[%s3 + $0x14c] sm:$0xf] %vm2123, %v1950
  %2208 = vst.msk [vmem:[%s3 + $0x150] sm:$0xf] %vm2123, %v1951
  %2209 = vst.msk [vmem:[%s3 + $0x154] sm:$0xf] %vm2123, %v1952
  %2210 = vst.msk [vmem:[%s3 + $0x158] sm:$0xf] %vm2123, %v1953
  %2211 = vst.msk [vmem:[%s3 + $0x15c] sm:$0xf] %vm2123, %v1954
  %2212 = vst.msk [vmem:[%s3 + $0x160] sm:$0xf] %vm2123, %v1955
  %2213 = vst.msk [vmem:[%s3 + $0x164] sm:$0xf] %vm2123, %v1956
  %2214 = vst.msk [vmem:[%s3 + $0x168] sm:$0xf] %vm2123, %v1957
  %2215 = vst.msk [vmem:[%s3 + $0x16c] sm:$0xf] %vm2123, %v1958
  %2216 = vst.msk [vmem:[%s3 + $0x170] sm:$0xf] %vm2123, %v1959
  %2217 = vst.msk [vmem:[%s3 + $0x174] sm:$0xf] %vm2123, %v1960
  %2218 = vst.msk [vmem:[%s3 + $0x178] sm:$0xf] %vm2123, %v1961
  %2219 = vst.msk [vmem:[%s3 + $0x17c] sm:$0xf] %vm2123, %v1962
  %2220 = vst.msk [vmem:[%s3 + $0x180] sm:$0xf] %vm2123, %v1963
  %2221 = vst.msk [vmem:[%s3 + $0x184] sm:$0xf] %vm2123, %v1964
  %2222 = vst.msk [vmem:[%s3 + $0x188] sm:$0xf] %vm2123, %v1965
  %2223 = vst.msk [vmem:[%s3 + $0x18c] sm:$0xf] %vm2123, %v1966
  %2224 = vst.msk [vmem:[%s3 + $0x190] sm:$0xf] %vm2123, %v1967
  %2225 = vst.msk [vmem:[%s3 + $0x194] sm:$0xf] %vm2123, %v1968
  %2226 = vst.msk [vmem:[%s3 + $0x198] sm:$0xf] %vm2123, %v1969
  %2227 = vst.msk [vmem:[%s3 + $0x19c] sm:$0xf] %vm2123, %v1970
  %2228 = vst.msk [vmem:[%s3 + $0x1a0] sm:$0xf] %vm2123, %v1971
  %2229 = vst.msk [vmem:[%s3 + $0x1a4] sm:$0xf] %vm2123, %v1972
  %2230 = vst.msk [vmem:[%s3 + $0x1a8] sm:$0xf] %vm2123, %v1973
  %2231 = vst.msk [vmem:[%s3 + $0x1ac] sm:$0xf] %vm2123, %v1974
  %2232 = vst.msk [vmem:[%s3 + $0x1b0] sm:$0xf] %vm2123, %v1975
  %2233 = vst.msk [vmem:[%s3 + $0x1b4] sm:$0xf] %vm2123, %v1976
  %2234 = vst.msk [vmem:[%s3 + $0x1b8] sm:$0xf] %vm2123, %v1977
  %2235 = vst.msk [vmem:[%s3 + $0x1bc] sm:$0xf] %vm2123, %v1978
  %2236 = vst.msk [vmem:[%s3 + $0x1c0] sm:$0xf] %vm2123, %v1979
  %2237 = vst.msk [vmem:[%s3 + $0x1c4] sm:$0xf] %vm2123, %v1980
  %2238 = vst.msk [vmem:[%s3 + $0x1c8] sm:$0xf] %vm2123, %v1981
  %2239 = vst.msk [vmem:[%s3 + $0x1cc] sm:$0xf] %vm2123, %v1982
  %2240 = vst.msk [vmem:[%s3 + $0x1d0] sm:$0xf] %vm2123, %v1983
  %2241 = vst.msk [vmem:[%s3 + $0x1d4] sm:$0xf] %vm2123, %v1984
  %2242 = vst.msk [vmem:[%s3 + $0x1d8] sm:$0xf] %vm2123, %v1985
  %2243 = vst.msk [vmem:[%s3 + $0x1dc] sm:$0xf] %vm2123, %v1986
  %2244 = vst.msk [vmem:[%s3 + $0x1e0] sm:$0xf] %vm2123, %v1987
  %2245 = vst.msk [vmem:[%s3 + $0x1e4] sm:$0xf] %vm2123, %v1988
  %2246 = vst.msk [vmem:[%s3 + $0x1e8] sm:$0xf] %vm2123, %v1989
  %2247 = vst.msk [vmem:[%s3 + $0x1ec] sm:$0xf] %vm2123, %v1990
  %2248 = vst.msk [vmem:[%s3 + $0x1f0] sm:$0xf] %vm2123, %v1991
  %2249 = vst.msk [vmem:[%s3 + $0x1f4] sm:$0xf] %vm2123, %v1992
  %2250 = vst.msk [vmem:[%s3 + $0x1f8] sm:$0xf] %vm2123, %v1993
  %2251 = vst.msk [vmem:[%s3 + $0x1fc] sm:$0xf] %vm2123, %v1994
  // Predicated region
  $region14: #{pairwise_headpose_facial_dynamics_loss.2} parent=0 // pred_check
    _
  $region15: #{pairwise_headpose_facial_dynamics_loss.2} parent=0 // pred_check_branch
    %2253 = sbr.rel (0) target = $region17
  $region16: #{pairwise_headpose_facial_dynamics_loss.2} parent=0 // pred_region
    _
  $region17: #{pairwise_headpose_facial_dynamics_loss.2} parent=0 // pred_fallthru
    _
  // Predicated region
  $region18: #{pairwise_headpose_facial_dynamics_loss.2} parent=0 // pred_check
    _
  $region19: #{pairwise_headpose_facial_dynamics_loss.2} parent=0 // pred_check_branch
    %2255 = sbr.rel (0) target = $region21
  $region20: #{pairwise_headpose_facial_dynamics_loss.2} parent=0 // pred_region
    _
  $region21: #{pairwise_headpose_facial_dynamics_loss.2} parent=0 // pred_fallthru
    _

// kernel: pairwise_headpose_facial_dynamics_loss.3
$region0: #{pairwise_headpose_facial_dynamics_loss.3}
  #allocation0 [shape = 'u32[]', space=smem, size = 0x4, offset = 0x4, fixed_abs, tag = 'smem constant byte address 0x4 - core index']
  #allocation1 [shape = 'u32[144,128]{1,0:T(1,128)}', space=vmem, size = 0x12000, scoped, tag = 'internal scratch']
  #allocation2 [shape = 'f32[4,32]{1,0:T(4,128)}', space=vmem, size = 0x800, scoped, tag = 'scratch operand']
  %s0 = inlined_call_operand.vmem [shape: bf16[4,2048], index: 0, kind: input, shape index: {}]
  %s1 = inlined_call_operand.vmem [shape: bf16[2048,32], index: 1, kind: input, shape index: {}]
  %s2 = inlined_call_operand.vmem [shape: f32[2,8], index: 2, kind: input, shape index: {}]
  %s3 = inlined_call_operand.vmem [shape: f32[2,8], index: 3, kind: input, shape index: {}]
  %s4 = inlined_call_operand.hbm [shape: f32[1,1], index: 4, kind: output, shape index: {}]
  %s5 = sld [smem:[#allocation0]]
  $region57: #{pairwise_headpose_facial_dynamics_loss.3} parent=0
    _
  %s7 = ssub.s32 1, %s5
  %s8 = scalar_select 0, %s7, %s5
  $region1: #{pairwise_headpose_facial_dynamics_loss.3} parent=0
    #allocation3 [shape = 'u8[512]{0}', space=smem, size = 0x200, scoped, tag = 'output window, operand 0, single buffered']
    #allocation4 [shape = 's32[2]{0}', space=sflag, size = 0x8, scoped, tag = 'scoped memory for pairwise_headpose_facial_dynamics_loss.3']
    %9 = vsyncpa [#allocation4], 0
    loop: start=0, step=1, limit=4
    $region2: #{pairwise_headpose_facial_dynamics_loss.3} parent=1 // loop_pre_header
      _
    $region3: #{pairwise_headpose_facial_dynamics_loss.3} parent=1 // loop_header
      %s11 = sphi 0, %s15
      %p12 = scmp.ge.s32.totalorder %s11, 4
      %s21 = sphi 0, %s23
      %s24 = sphi 0, %s21
      %s25 = sphi 0, %s24
      %s41 = sphi 0, %s25
      %s47 = sphi 0, %s49
      %s50 = sphi 0, %s47
      %s51 = sphi 0, %s50
      %s67 = sphi 0, %s51
      %s71 = sphi 0, %s71
      %s73 = sphi 0, %s71
      %s74 = sphi 0, %s73
      %s88 = sphi 0, %s74
      %s92 = sphi 0, %s92
      %s94 = sphi 0, %s92
      %s95 = sphi 0, %s94
      %s109 = sphi 0, %s95
      %s113 = sphi 0, %s113
      %s115 = sphi 0, %s113
      %s116 = sphi 0, %s115
      %s130 = sphi 0, %s116
    $region4: #{pairwise_headpose_facial_dynamics_loss.3} parent=1 // loop_header_branch
      %14 = sbr.rel (%p12) target = $region8
    $region5: #{pairwise_headpose_facial_dynamics_loss.3} parent=1 // loop_body
      %s16 = ssub.s32 %s11, 1
      %s17 = ssub.s32 %s11, 2
      %s18 = sadd.s32 %s11, 1
      %s19 = ssub.s32 %s11, %s18
      %p20 = scmp.eq.s32.totalorder %s19, 0
      %s22 = sadd.s32 %s21, 1
      %s23 = scalar_select %p20, %s21, %s22
      %p26 = pneg %p20
      %p27 = scmp.eq.s32.totalorder %s11, 1
      %p28 = por %p26, %p27
      %p29 = scmp.ne.s32.totalorder %s21, %s24
      %p30 = scmp.eq.s32.totalorder %s11, 0
      %p31 = por %p29, %p30
      %p32 = scmp.ne.s32.totalorder %s21, %s24
      %p33 = scmp.eq.s32.totalorder %s16, 1
      %p34 = por %p32, %p33
      %p35 = scmp.ne.s32.totalorder %s24, %s25
      %p36 = scmp.eq.s32.totalorder %s16, 0
      %p37 = por %p35, %p36
      %p38 = scmp.ne.s32.totalorder %s24, %s25
      %p39 = scmp.eq.s32.totalorder %s17, 1
      %p40 = por %p38, %p39
      %p42 = scmp.ne.s32.totalorder %s25, %s41
      %p43 = scmp.eq.s32.totalorder %s17, 0
      %p44 = por %p42, %p43
      %s45 = ssub.s32 %s11, %s18
      %p46 = scmp.eq.s32.totalorder %s45, 0
      %s48 = sadd.s32 %s47, 1
      %s49 = scalar_select %p46, %s47, %s48
      %p52 = pneg %p46
      %p53 = scmp.eq.s32.totalorder %s11, 1
      %p54 = por %p52, %p53
      %p55 = scmp.ne.s32.totalorder %s47, %s50
      %p56 = scmp.eq.s32.totalorder %s11, 0
      %p57 = por %p55, %p56
      %p58 = scmp.ne.s32.totalorder %s47, %s50
      %p59 = scmp.eq.s32.totalorder %s16, 1
      %p60 = por %p58, %p59
      %p61 = scmp.ne.s32.totalorder %s50, %s51
      %p62 = scmp.eq.s32.totalorder %s16, 0
      %p63 = por %p61, %p62
      %p64 = scmp.ne.s32.totalorder %s50, %s51
      %p65 = scmp.eq.s32.totalorder %s17, 1
      %p66 = por %p64, %p65
      %p68 = scmp.ne.s32.totalorder %s51, %s67
      %p69 = scmp.eq.s32.totalorder %s17, 0
      %p70 = por %p68, %p69
      %s72 = sadd.s32 %s71, 1
      %p75 = scmp.eq.s32.totalorder %s11, 1
      %p76 = scmp.ne.s32.totalorder %s71, %s73
      %p77 = scmp.eq.s32.totalorder %s11, 0
      %p78 = por %p76, %p77
      %p79 = scmp.ne.s32.totalorder %s71, %s73
      %p80 = scmp.eq.s32.totalorder %s16, 1
      %p81 = por %p79, %p80
      %p82 = scmp.ne.s32.totalorder %s73, %s74
      %p83 = scmp.eq.s32.totalorder %s16, 0
      %p84 = por %p82, %p83
      %p85 = scmp.ne.s32.totalorder %s73, %s74
      %p86 = scmp.eq.s32.totalorder %s17, 1
      %p87 = por %p85, %p86
      %p89 = scmp.ne.s32.totalorder %s74, %s88
      %p90 = scmp.eq.s32.totalorder %s17, 0
      %p91 = por %p89, %p90
      %s93 = sadd.s32 %s92, 1
      %p96 = scmp.eq.s32.totalorder %s11, 1
      %p97 = scmp.ne.s32.totalorder %s92, %s94
      %p98 = scmp.eq.s32.totalorder %s11, 0
      %p99 = por %p97, %p98
      %p100 = scmp.ne.s32.totalorder %s92, %s94
      %p101 = scmp.eq.s32.totalorder %s16, 1
      %p102 = por %p100, %p101
      %p103 = scmp.ne.s32.totalorder %s94, %s95
      %p104 = scmp.eq.s32.totalorder %s16, 0
      %p105 = por %p103, %p104
      %p106 = scmp.ne.s32.totalorder %s94, %s95
      %p107 = scmp.eq.s32.totalorder %s17, 1
      %p108 = por %p106, %p107
      %p110 = scmp.ne.s32.totalorder %s95, %s109
      %p111 = scmp.eq.s32.totalorder %s17, 0
      %p112 = por %p110, %p111
      %s114 = sadd.s32 %s113, 1
      %p117 = scmp.eq.s32.totalorder %s11, 1
      %p118 = scmp.ne.s32.totalorder %s113, %s115
      %p119 = scmp.eq.s32.totalorder %s11, 0
      %p120 = por %p118, %p119
      %p121 = scmp.ne.s32.totalorder %s113, %s115
      %p122 = scmp.eq.s32.totalorder %s16, 1
      %p123 = por %p121, %p122
      %p124 = scmp.ne.s32.totalorder %s115, %s116
      %p125 = scmp.eq.s32.totalorder %s16, 0
      %p126 = por %p124, %p125
      %p127 = scmp.ne.s32.totalorder %s115, %s116
      %p128 = scmp.eq.s32.totalorder %s17, 1
      %p129 = por %p127, %p128
      %p131 = scmp.ne.s32.totalorder %s116, %s130
      %p132 = scmp.eq.s32.totalorder %s17, 0
      %p133 = por %p131, %p132
      %p134 = scmp.le.s32.totalorder 1, %s11
      %p135 = scmp.lt.s32.totalorder %s11, 3
      %p136 = pnand %p134, %p135
      %p137 = pneg %p136
      // Predicated region
      $region9: #{pairwise_headpose_facial_dynamics_loss.3} parent=5 // pred_check
        _
      $region10: #{pairwise_headpose_facial_dynamics_loss.3} parent=5 // pred_check_branch
        %139 = sbr.rel (%p136) target = $region12
      $region11: #{pairwise_headpose_facial_dynamics_loss.3} parent=5 // pred_region
        %s140 = ssub.s32 %s11, 1
        // Predicated region
        $region13: #{pairwise_headpose_facial_dynamics_loss.3} parent=11 // pred_check
          %p141 = pneg %p84
        $region14: #{pairwise_headpose_facial_dynamics_loss.3} parent=11 // pred_check_branch
          %143 = sbr.rel (%p141) target = $region16
        $region15: #{pairwise_headpose_facial_dynamics_loss.3} parent=11 // pred_region
          _
        $region16: #{pairwise_headpose_facial_dynamics_loss.3} parent=11 // pred_fallthru
          _
        // Predicated region
        $region17: #{pairwise_headpose_facial_dynamics_loss.3} parent=11 // pred_check
          %p144 = pneg %p105
        $region18: #{pairwise_headpose_facial_dynamics_loss.3} parent=11 // pred_check_branch
          %146 = sbr.rel (%p144) target = $region20
        $region19: #{pairwise_headpose_facial_dynamics_loss.3} parent=11 // pred_region
          _
        $region20: #{pairwise_headpose_facial_dynamics_loss.3} parent=11 // pred_fallthru
          _
      $region12: #{pairwise_headpose_facial_dynamics_loss.3} parent=5 // pred_fallthru
        _
      %p147 = scmp.lt.s32.totalorder %s11, 2
      // Predicated region
      $region21: #{pairwise_headpose_facial_dynamics_loss.3} parent=5 // pred_check
        %p148 = pneg %p147
      $region22: #{pairwise_headpose_facial_dynamics_loss.3} parent=5 // pred_check_branch
        %150 = sbr.rel (%p148) target = $region24
      $region23: #{pairwise_headpose_facial_dynamics_loss.3} parent=5 // pred_region
        // Predicated region
        $region25: #{pairwise_headpose_facial_dynamics_loss.3} parent=23 // pred_check
          %p151 = pneg %p31
        $region26: #{pairwise_headpose_facial_dynamics_loss.3} parent=23 // pred_check_branch
          %153 = sbr.rel (%p151) target = $region28
        $region27: #{pairwise_headpose_facial_dynamics_loss.3} parent=23 // pred_region
          %s154 = smul.u32 8, %s11
          %p155 = scmp.lt.s32.totalorder %s154, 15
          %s156 = scalar_select %p155, %s154, 15
          %s157 = smul.addr %s156, 2
          %s158 = scalar_lea.vmem %s0, %s157
          %s159 = smul.u32 8, %s11
        $region28: #{pairwise_headpose_facial_dynamics_loss.3} parent=23 // pred_fallthru
          _
        // Predicated region
        $region29: #{pairwise_headpose_facial_dynamics_loss.3} parent=23 // pred_check
          %p160 = pneg %p57
        $region30: #{pairwise_headpose_facial_dynamics_loss.3} parent=23 // pred_check_branch
          %162 = sbr.rel (%p160) target = $region32
        $region31: #{pairwise_headpose_facial_dynamics_loss.3} parent=23 // pred_region
          %s163 = smul.u32 128, %s11
          %p164 = scmp.lt.s32.totalorder %s163, 255
          %s165 = scalar_select %p164, %s163, 255
          %s166 = smul.addr %s165, 4
          %s167 = scalar_lea.vmem %s1, %s166
          %s168 = smul.u32 128, %s11
        $region32: #{pairwise_headpose_facial_dynamics_loss.3} parent=23 // pred_fallthru
          _
      $region24: #{pairwise_headpose_facial_dynamics_loss.3} parent=5 // pred_fallthru
        _
      %p169 = scmp.le.s32.totalorder 1, %s11
      %p170 = scmp.lt.s32.totalorder %s11, 3
      %p171 = pnand %p169, %p170
      %p172 = pneg %p171
      // Predicated region
      $region33: #{pairwise_headpose_facial_dynamics_loss.3} parent=5 // pred_check
        _
      $region34: #{pairwise_headpose_facial_dynamics_loss.3} parent=5 // pred_check_branch
        %174 = sbr.rel (%p171) target = $region36
      $region35: #{pairwise_headpose_facial_dynamics_loss.3} parent=5 // pred_region
        %s175 = ssub.s32 %s11, 1
        %s176 = smul.u32 8, %s16
        %p177 = scmp.lt.s32.totalorder %s176, 15
        %s178 = scalar_select %p177, %s176, 15
        %s179 = smul.addr %s178, 2
        %s180 = scalar_lea.vmem %s0, %s179
        %p181 = pneg %p37
        %p182 = pneg %p34
        %s183 = smul.u32 128, %s16
        %p184 = scmp.lt.s32.totalorder %s183, 255
        %s185 = scalar_select %p184, %s183, 255
        %s186 = smul.addr %s185, 4
        %s187 = scalar_lea.vmem %s1, %s186
        %p188 = pneg %p63
        %p189 = pneg %p60
        %p190 = pneg %p84
        %p191 = pneg %p81
        %p192 = pneg %p105
        %p193 = pneg %p102
        %p194 = pneg %p126
        %p195 = pneg %p123
        %s196 = smul.u32 8, %s16
        %p197 = scmp.lt.s32.totalorder %s196, 15
        %s198 = scalar_select %p197, %s196, 15
        %s199 = smul.addr %s198, 2
        %s200 = scalar_lea.vmem %s0, %s199
        %s201 = smul.u32 8, %s16
        %s202 = smul.u32 128, %s16
        %p203 = scmp.lt.s32.totalorder %s202, 255
        %s204 = scalar_select %p203, %s202, 255
        %s205 = smul.addr %s204, 4
        %s206 = scalar_lea.vmem %s1, %s205
        %s207 = smul.u32 128, %s16
        %p209 = scmp.eq.s32.totalorder %s16, 0
        // Predicated region
        $region37: #{pairwise_headpose_facial_dynamics_loss.3} parent=35 // pred_check
          %p210 = pneg %p209
        $region38: #{pairwise_headpose_facial_dynamics_loss.3} parent=35 // pred_check_branch
          %212 = sbr.rel (%p210) target = $region40
        $region39: #{pairwise_headpose_facial_dynamics_loss.3} parent=35 // pred_region
          %vm213 = vcmask 257024
          %214 = vst.msk [vmem:[#allocation2] sm:$0xf] %vm213, 0.0
          %s215 = scalar_lea.smem [#allocation3], 0
          %216 = sst [smem:[%s215]] 0.0
        $region40: #{pairwise_headpose_facial_dynamics_loss.3} parent=35 // pred_fallthru
          _
        %v217 = vld [vmem:[#allocation2] sm:$0xf]
        %v218 = vld [vmem:[%s200] sm:$0xff]
        %v219 = vld [vmem:[%s200 + $0x8] sm:$0xff]
        %v220 = vld [vmem:[%s206] sm:$0xf]
        %v221 = vld [vmem:[%s206 + $0x4] sm:$0xf]
        %v222 = vld [vmem:[%s206 + $0x8] sm:$0xf]
        %v223 = vld [vmem:[%s206 + $0xc] sm:$0xf]
        %v224 = vld [vmem:[%s206 + $0x10] sm:$0xf]
        %v225 = vld [vmem:[%s206 + $0x14] sm:$0xf]
        %v226 = vld [vmem:[%s206 + $0x18] sm:$0xf]
        %v227 = vld [vmem:[%s206 + $0x1c] sm:$0xf]
        %v228 = vld [vmem:[%s206 + $0x20] sm:$0xf]
        %v229 = vld [vmem:[%s206 + $0x24] sm:$0xf]
        %v230 = vld [vmem:[%s206 + $0x28] sm:$0xf]
        %v231 = vld [vmem:[%s206 + $0x2c] sm:$0xf]
        %v232 = vld [vmem:[%s206 + $0x30] sm:$0xf]
        %v233 = vld [vmem:[%s206 + $0x34] sm:$0xf]
        %v234 = vld [vmem:[%s206 + $0x38] sm:$0xf]
        %v235 = vld [vmem:[%s206 + $0x3c] sm:$0xf]
        %v236 = vld [vmem:[%s206 + $0x40] sm:$0xf]
        %v237 = vld [vmem:[%s206 + $0x44] sm:$0xf]
        %v238 = vld [vmem:[%s206 + $0x48] sm:$0xf]
        %v239 = vld [vmem:[%s206 + $0x4c] sm:$0xf]
        %v240 = vld [vmem:[%s206 + $0x50] sm:$0xf]
        %v241 = vld [vmem:[%s206 + $0x54] sm:$0xf]
        %v242 = vld [vmem:[%s206 + $0x58] sm:$0xf]
        %v243 = vld [vmem:[%s206 + $0x5c] sm:$0xf]
        %v244 = vld [vmem:[%s206 + $0x60] sm:$0xf]
        %v245 = vld [vmem:[%s206 + $0x64] sm:$0xf]
        %v246 = vld [vmem:[%s206 + $0x68] sm:$0xf]
        %v247 = vld [vmem:[%s206 + $0x6c] sm:$0xf]
        %v248 = vld [vmem:[%s206 + $0x70] sm:$0xf]
        %v249 = vld [vmem:[%s206 + $0x74] sm:$0xf]
        %v250 = vld [vmem:[%s206 + $0x78] sm:$0xf]
        %v251 = vld [vmem:[%s206 + $0x7c] sm:$0xf]
        %v252 = vld [vmem:[%s206 + $0x80] sm:$0xf]
        %v253 = vld [vmem:[%s206 + $0x84] sm:$0xf]
        %v254 = vld [vmem:[%s206 + $0x88] sm:$0xf]
        %v255 = vld [vmem:[%s206 + $0x8c] sm:$0xf]
        %v256 = vld [vmem:[%s206 + $0x90] sm:$0xf]
        %v257 = vld [vmem:[%s206 + $0x94] sm:$0xf]
        %v258 = vld [vmem:[%s206 + $0x98] sm:$0xf]
        %v259 = vld [vmem:[%s206 + $0x9c] sm:$0xf]
        %v260 = vld [vmem:[%s206 + $0xa0] sm:$0xf]
        %v261 = vld [vmem:[%s206 + $0xa4] sm:$0xf]
        %v262 = vld [vmem:[%s206 + $0xa8] sm:$0xf]
        %v263 = vld [vmem:[%s206 + $0xac] sm:$0xf]
        %v264 = vld [vmem:[%s206 + $0xb0] sm:$0xf]
        %v265 = vld [vmem:[%s206 + $0xb4] sm:$0xf]
        %v266 = vld [vmem:[%s206 + $0xb8] sm:$0xf]
        %v267 = vld [vmem:[%s206 + $0xbc] sm:$0xf]
        %v268 = vld [vmem:[%s206 + $0xc0] sm:$0xf]
        %v269 = vld [vmem:[%s206 + $0xc4] sm:$0xf]
        %v270 = vld [vmem:[%s206 + $0xc8] sm:$0xf]
        %v271 = vld [vmem:[%s206 + $0xcc] sm:$0xf]
        %v272 = vld [vmem:[%s206 + $0xd0] sm:$0xf]
        %v273 = vld [vmem:[%s206 + $0xd4] sm:$0xf]
        %v274 = vld [vmem:[%s206 + $0xd8] sm:$0xf]
        %v275 = vld [vmem:[%s206 + $0xdc] sm:$0xf]
        %v276 = vld [vmem:[%s206 + $0xe0] sm:$0xf]
        %v277 = vld [vmem:[%s206 + $0xe4] sm:$0xf]
        %v278 = vld [vmem:[%s206 + $0xe8] sm:$0xf]
        %v279 = vld [vmem:[%s206 + $0xec] sm:$0xf]
        %v280 = vld [vmem:[%s206 + $0xf0] sm:$0xf]
        %v281 = vld [vmem:[%s206 + $0xf4] sm:$0xf]
        %v282 = vld [vmem:[%s206 + $0xf8] sm:$0xf]
        %v283 = vld [vmem:[%s206 + $0xfc] sm:$0xf]
        %v284 = vld [vmem:[%s206 + $0x100] sm:$0xf]
        %v285 = vld [vmem:[%s206 + $0x104] sm:$0xf]
        %v286 = vld [vmem:[%s206 + $0x108] sm:$0xf]
        %v287 = vld [vmem:[%s206 + $0x10c] sm:$0xf]
        %v288 = vld [vmem:[%s206 + $0x110] sm:$0xf]
        %v289 = vld [vmem:[%s206 + $0x114] sm:$0xf]
        %v290 = vld [vmem:[%s206 + $0x118] sm:$0xf]
        %v291 = vld [vmem:[%s206 + $0x11c] sm:$0xf]
        %v292 = vld [vmem:[%s206 + $0x120] sm:$0xf]
        %v293 = vld [vmem:[%s206 + $0x124] sm:$0xf]
        %v294 = vld [vmem:[%s206 + $0x128] sm:$0xf]
        %v295 = vld [vmem:[%s206 + $0x12c] sm:$0xf]
        %v296 = vld [vmem:[%s206 + $0x130] sm:$0xf]
        %v297 = vld [vmem:[%s206 + $0x134] sm:$0xf]
        %v298 = vld [vmem:[%s206 + $0x138] sm:$0xf]
        %v299 = vld [vmem:[%s206 + $0x13c] sm:$0xf]
        %v300 = vld [vmem:[%s206 + $0x140] sm:$0xf]
        %v301 = vld [vmem:[%s206 + $0x144] sm:$0xf]
        %v302 = vld [vmem:[%s206 + $0x148] sm:$0xf]
        %v303 = vld [vmem:[%s206 + $0x14c] sm:$0xf]
        %v304 = vld [vmem:[%s206 + $0x150] sm:$0xf]
        %v305 = vld [vmem:[%s206 + $0x154] sm:$0xf]
        %v306 = vld [vmem:[%s206 + $0x158] sm:$0xf]
        %v307 = vld [vmem:[%s206 + $0x15c] sm:$0xf]
        %v308 = vld [vmem:[%s206 + $0x160] sm:$0xf]
        %v309 = vld [vmem:[%s206 + $0x164] sm:$0xf]
        %v310 = vld [vmem:[%s206 + $0x168] sm:$0xf]
        %v311 = vld [vmem:[%s206 + $0x16c] sm:$0xf]
        %v312 = vld [vmem:[%s206 + $0x170] sm:$0xf]
        %v313 = vld [vmem:[%s206 + $0x174] sm:$0xf]
        %v314 = vld [vmem:[%s206 + $0x178] sm:$0xf]
        %v315 = vld [vmem:[%s206 + $0x17c] sm:$0xf]
        %v316 = vld [vmem:[%s206 + $0x180] sm:$0xf]
        %v317 = vld [vmem:[%s206 + $0x184] sm:$0xf]
        %v318 = vld [vmem:[%s206 + $0x188] sm:$0xf]
        %v319 = vld [vmem:[%s206 + $0x18c] sm:$0xf]
        %v320 = vld [vmem:[%s206 + $0x190] sm:$0xf]
        %v321 = vld [vmem:[%s206 + $0x194] sm:$0xf]
        %v322 = vld [vmem:[%s206 + $0x198] sm:$0xf]
        %v323 = vld [vmem:[%s206 + $0x19c] sm:$0xf]
        %v324 = vld [vmem:[%s206 + $0x1a0] sm:$0xf]
        %v325 = vld [vmem:[%s206 + $0x1a4] sm:$0xf]
        %v326 = vld [vmem:[%s206 + $0x1a8] sm:$0xf]
        %v327 = vld [vmem:[%s206 + $0x1ac] sm:$0xf]
        %v328 = vld [vmem:[%s206 + $0x1b0] sm:$0xf]
        %v329 = vld [vmem:[%s206 + $0x1b4] sm:$0xf]
        %v330 = vld [vmem:[%s206 + $0x1b8] sm:$0xf]
        %v331 = vld [vmem:[%s206 + $0x1bc] sm:$0xf]
        %v332 = vld [vmem:[%s206 + $0x1c0] sm:$0xf]
        %v333 = vld [vmem:[%s206 + $0x1c4] sm:$0xf]
        %v334 = vld [vmem:[%s206 + $0x1c8] sm:$0xf]
        %v335 = vld [vmem:[%s206 + $0x1cc] sm:$0xf]
        %v336 = vld [vmem:[%s206 + $0x1d0] sm:$0xf]
        %v337 = vld [vmem:[%s206 + $0x1d4] sm:$0xf]
        %v338 = vld [vmem:[%s206 + $0x1d8] sm:$0xf]
        %v339 = vld [vmem:[%s206 + $0x1dc] sm:$0xf]
        %v340 = vld [vmem:[%s206 + $0x1e0] sm:$0xf]
        %v341 = vld [vmem:[%s206 + $0x1e4] sm:$0xf]
        %v342 = vld [vmem:[%s206 + $0x1e8] sm:$0xf]
        %v343 = vld [vmem:[%s206 + $0x1ec] sm:$0xf]
        %v344 = vld [vmem:[%s206 + $0x1f0] sm:$0xf]
        %v345 = vld [vmem:[%s206 + $0x1f4] sm:$0xf]
        %v346 = vld [vmem:[%s206 + $0x1f8] sm:$0xf]
        %v347 = vld [vmem:[%s206 + $0x1fc] sm:$0xf]
        %v350 = vcombine.high %v218, %v218
        %v352 = vunpack.c.l.s4 1983009808
        %v353 = vunpack.c.0.s8 %v352
        %v354 = vlaneseq
        %v355 = vshrl.u32 %v354, 7
        %v356 = vsub.s32 %v353, %v355
        %v357 = vrot.slane %v218, %v356
        %v359 = vunpack.c.l.s4 1983009808
        %v360 = vunpack.c.0.s8 %v359
        %v361 = vlaneseq
        %v362 = vshrl.u32 %v361, 7
        %v363 = vsub.s32 %v360, %v362
        %v364 = vrot.slane %v350, %v363
        %v365 = vcombine.high %v357, %v357
        %v366 = vcombine.high %v364, %v364
        %v367 = vcombine.high %v219, %v219
        %v369 = vunpack.c.l.s4 1983009808
        %v370 = vunpack.c.0.s8 %v369
        %v371 = vlaneseq
        %v372 = vshrl.u32 %v371, 7
        %v373 = vsub.s32 %v370, %v372
        %v374 = vrot.slane %v219, %v373
        %v376 = vunpack.c.l.s4 1983009808
        %v377 = vunpack.c.0.s8 %v376
        %v378 = vlaneseq
        %v379 = vshrl.u32 %v378, 7
        %v380 = vsub.s32 %v377, %v379
        %v381 = vrot.slane %v367, %v380
        %v382 = vcombine.high %v374, %v374
        %v383 = vcombine.high %v381, %v381
        %v520 = vunpack.c.l.b16 %v220
        %v521 = vunpack.c.l.b16 %v221
        %v522 = vunpack.c.l.b16 %v222
        %v523 = vunpack.c.l.b16 %v223
        %v524 = vunpack.c.l.b16 %v224
        %v525 = vunpack.c.l.b16 %v225
        %v526 = vunpack.c.l.b16 %v226
        %v527 = vunpack.c.l.b16 %v227
        %v528 = vunpack.c.l.b16 %v228
        %v529 = vunpack.c.l.b16 %v229
        %v530 = vunpack.c.l.b16 %v230
        %v531 = vunpack.c.l.b16 %v231
        %v532 = vunpack.c.l.b16 %v232
        %v533 = vunpack.c.l.b16 %v233
        %v534 = vunpack.c.l.b16 %v234
        %v535 = vunpack.c.l.b16 %v235
        %v536 = vunpack.c.l.b16 %v236
        %v537 = vunpack.c.l.b16 %v237
        %v538 = vunpack.c.l.b16 %v238
        %v539 = vunpack.c.l.b16 %v239
        %v540 = vunpack.c.l.b16 %v240
        %v541 = vunpack.c.l.b16 %v241
        %v542 = vunpack.c.l.b16 %v242
        %v543 = vunpack.c.l.b16 %v243
        %v544 = vunpack.c.l.b16 %v244
        %v545 = vunpack.c.l.b16 %v245
        %v546 = vunpack.c.l.b16 %v246
        %v547 = vunpack.c.l.b16 %v247
        %v548 = vunpack.c.l.b16 %v248
        %v549 = vunpack.c.l.b16 %v249
        %v550 = vunpack.c.l.b16 %v250
        %v551 = vunpack.c.l.b16 %v251
        %v552 = vunpack.c.l.b16 %v252
        %v553 = vunpack.c.l.b16 %v253
        %v554 = vunpack.c.l.b16 %v254
        %v555 = vunpack.c.l.b16 %v255
        %v556 = vunpack.c.l.b16 %v256
        %v557 = vunpack.c.l.b16 %v257
        %v558 = vunpack.c.l.b16 %v258
        %v559 = vunpack.c.l.b16 %v259
        %v560 = vunpack.c.l.b16 %v260
        %v561 = vunpack.c.l.b16 %v261
        %v562 = vunpack.c.l.b16 %v262
        %v563 = vunpack.c.l.b16 %v263
        %v564 = vunpack.c.l.b16 %v264
        %v565 = vunpack.c.l.b16 %v265
        %v566 = vunpack.c.l.b16 %v266
        %v567 = vunpack.c.l.b16 %v267
        %v568 = vunpack.c.l.b16 %v268
        %v569 = vunpack.c.l.b16 %v269
        %v570 = vunpack.c.l.b16 %v270
        %v571 = vunpack.c.l.b16 %v271
        %v572 = vunpack.c.l.b16 %v272
        %v573 = vunpack.c.l.b16 %v273
        %v574 = vunpack.c.l.b16 %v274
        %v575 = vunpack.c.l.b16 %v275
        %v576 = vunpack.c.l.b16 %v276
        %v577 = vunpack.c.l.b16 %v277
        %v578 = vunpack.c.l.b16 %v278
        %v579 = vunpack.c.l.b16 %v279
        %v580 = vunpack.c.l.b16 %v280
        %v581 = vunpack.c.l.b16 %v281
        %v582 = vunpack.c.l.b16 %v282
        %v583 = vunpack.c.l.b16 %v283
        %v584 = vunpack.c.l.b16 %v284
        %v585 = vunpack.c.l.b16 %v285
        %v586 = vunpack.c.l.b16 %v286
        %v587 = vunpack.c.l.b16 %v287
        %v588 = vunpack.c.l.b16 %v288
        %v589 = vunpack.c.l.b16 %v289
        %v590 = vunpack.c.l.b16 %v290
        %v591 = vunpack.c.l.b16 %v291
        %v592 = vunpack.c.l.b16 %v292
        %v593 = vunpack.c.l.b16 %v293
        %v594 = vunpack.c.l.b16 %v294
        %v595 = vunpack.c.l.b16 %v295
        %v596 = vunpack.c.l.b16 %v296
        %v597 = vunpack.c.l.b16 %v297
        %v598 = vunpack.c.l.b16 %v298
        %v599 = vunpack.c.l.b16 %v299
        %v600 = vunpack.c.l.b16 %v300
        %v601 = vunpack.c.l.b16 %v301
        %v602 = vunpack.c.l.b16 %v302
        %v603 = vunpack.c.l.b16 %v303
        %v604 = vunpack.c.l.b16 %v304
        %v605 = vunpack.c.l.b16 %v305
        %v606 = vunpack.c.l.b16 %v306
        %v607 = vunpack.c.l.b16 %v307
        %v608 = vunpack.c.l.b16 %v308
        %v609 = vunpack.c.l.b16 %v309
        %v610 = vunpack.c.l.b16 %v310
        %v611 = vunpack.c.l.b16 %v311
        %v612 = vunpack.c.l.b16 %v312
        %v613 = vunpack.c.l.b16 %v313
        %v614 = vunpack.c.l.b16 %v314
        %v615 = vunpack.c.l.b16 %v315
        %v616 = vunpack.c.l.b16 %v316
        %v617 = vunpack.c.l.b16 %v317
        %v618 = vunpack.c.l.b16 %v318
        %v619 = vunpack.c.l.b16 %v319
        %v620 = vunpack.c.l.b16 %v320
        %v621 = vunpack.c.l.b16 %v321
        %v622 = vunpack.c.l.b16 %v322
        %v623 = vunpack.c.l.b16 %v323
        %v624 = vunpack.c.l.b16 %v324
        %v625 = vunpack.c.l.b16 %v325
        %v626 = vunpack.c.l.b16 %v326
        %v627 = vunpack.c.l.b16 %v327
        %v628 = vunpack.c.l.b16 %v328
        %v629 = vunpack.c.l.b16 %v329
        %v630 = vunpack.c.l.b16 %v330
        %v631 = vunpack.c.l.b16 %v331
        %v632 = vunpack.c.l.b16 %v332
        %v633 = vunpack.c.l.b16 %v333
        %v634 = vunpack.c.l.b16 %v334
        %v635 = vunpack.c.l.b16 %v335
        %v636 = vunpack.c.l.b16 %v336
        %v637 = vunpack.c.l.b16 %v337
        %v638 = vunpack.c.l.b16 %v338
        %v639 = vunpack.c.l.b16 %v339
        %v640 = vunpack.c.l.b16 %v340
        %v641 = vunpack.c.l.b16 %v341
        %v642 = vunpack.c.l.b16 %v342
        %v643 = vunpack.c.l.b16 %v343
        %v644 = vunpack.c.l.b16 %v344
        %v645 = vunpack.c.l.b16 %v345
        %v646 = vunpack.c.l.b16 %v346
        %v647 = vunpack.c.l.b16 %v347
        %v648 = vpack.c.b16 %v521, %v520
        %v649 = vpack.c.b16 %v523, %v522
        %v650 = vpack.c.b16 %v525, %v524
        %v651 = vpack.c.b16 %v527, %v526
        %v652 = vpack.c.b16 %v529, %v528
        %v653 = vpack.c.b16 %v531, %v530
        %v654 = vpack.c.b16 %v533, %v532
        %v655 = vpack.c.b16 %v535, %v534
        %v656 = vpack.c.b16 %v537, %v536
        %v657 = vpack.c.b16 %v539, %v538
        %v658 = vpack.c.b16 %v541, %v540
        %v659 = vpack.c.b16 %v543, %v542
        %v660 = vpack.c.b16 %v545, %v544
        %v661 = vpack.c.b16 %v547, %v546
        %v662 = vpack.c.b16 %v549, %v548
        %v663 = vpack.c.b16 %v551, %v550
        %v664 = vpack.c.b16 %v553, %v552
        %v665 = vpack.c.b16 %v555, %v554
        %v666 = vpack.c.b16 %v557, %v556
        %v667 = vpack.c.b16 %v559, %v558
        %v668 = vpack.c.b16 %v561, %v560
        %v669 = vpack.c.b16 %v563, %v562
        %v670 = vpack.c.b16 %v565, %v564
        %v671 = vpack.c.b16 %v567, %v566
        %v672 = vpack.c.b16 %v569, %v568
        %v673 = vpack.c.b16 %v571, %v570
        %v674 = vpack.c.b16 %v573, %v572
        %v675 = vpack.c.b16 %v575, %v574
        %v676 = vpack.c.b16 %v577, %v576
        %v677 = vpack.c.b16 %v579, %v578
        %v678 = vpack.c.b16 %v581, %v580
        %v679 = vpack.c.b16 %v583, %v582
        %v680 = vpack.c.b16 %v585, %v584
        %v681 = vpack.c.b16 %v587, %v586
        %v682 = vpack.c.b16 %v589, %v588
        %v683 = vpack.c.b16 %v591, %v590
        %v684 = vpack.c.b16 %v593, %v592
        %v685 = vpack.c.b16 %v595, %v594
        %v686 = vpack.c.b16 %v597, %v596
        %v687 = vpack.c.b16 %v599, %v598
        %v688 = vpack.c.b16 %v601, %v600
        %v689 = vpack.c.b16 %v603, %v602
        %v690 = vpack.c.b16 %v605, %v604
        %v691 = vpack.c.b16 %v607, %v606
        %v692 = vpack.c.b16 %v609, %v608
        %v693 = vpack.c.b16 %v611, %v610
        %v694 = vpack.c.b16 %v613, %v612
        %v695 = vpack.c.b16 %v615, %v614
        %v696 = vpack.c.b16 %v617, %v616
        %v697 = vpack.c.b16 %v619, %v618
        %v698 = vpack.c.b16 %v621, %v620
        %v699 = vpack.c.b16 %v623, %v622
        %v700 = vpack.c.b16 %v625, %v624
        %v701 = vpack.c.b16 %v627, %v626
        %v702 = vpack.c.b16 %v629, %v628
        %v703 = vpack.c.b16 %v631, %v630
        %v704 = vpack.c.b16 %v633, %v632
        %v705 = vpack.c.b16 %v635, %v634
        %v706 = vpack.c.b16 %v637, %v636
        %v707 = vpack.c.b16 %v639, %v638
        %v708 = vpack.c.b16 %v641, %v640
        %v709 = vpack.c.b16 %v643, %v642
        %v710 = vpack.c.b16 %v645, %v644
        %v711 = vpack.c.b16 %v647, %v646
        %776 = vmatprep.subr.bf16.mxu0 0
        %777 = vmatpush1.bf16.msra.mxu0 %v655
        %778 = vmatprep.subr.bf16.mxu0 0
        %779 = vmatpush1.bf16.msra.mxu0 %v654
        %780 = vmatprep.subr.bf16.mxu0 0
        %781 = vmatpush1.bf16.msra.mxu0 %v653
        %782 = vmatprep.subr.bf16.mxu0 0
        %783 = vmatpush1.bf16.msra.mxu0 %v652
        %784 = vmatprep.subr.bf16.mxu0 0
        %785 = vmatpush1.bf16.msra.mxu0 %v651
        %786 = vmatprep.subr.bf16.mxu0 0
        %787 = vmatpush1.bf16.msra.mxu0 %v650
        %788 = vmatprep.subr.bf16.mxu0 0
        %789 = vmatpush1.bf16.msra.mxu0 %v649
        %790 = vmatprep.subr.bf16.mxu0 0
        %791 = vmatpush1.bf16.msra.mxu0 %v648
        %792 = vmatprep.subr.bf16.mxu0 0
        %793 = vmatpush2.bf16.msra.mxu0 %v663
        %794 = vmatprep.subr.bf16.mxu0 0
        %795 = vmatpush2.bf16.msra.mxu0 %v662
        %796 = vmatprep.subr.bf16.mxu0 0
        %797 = vmatpush2.bf16.msra.mxu0 %v661
        %798 = vmatprep.subr.bf16.mxu0 0
        %799 = vmatpush2.bf16.msra.mxu0 %v660
        %800 = vmatprep.subr.bf16.mxu0 0
        %801 = vmatpush2.bf16.msra.mxu0 %v659
        %802 = vmatprep.subr.bf16.mxu0 0
        %803 = vmatpush2.bf16.msra.mxu0 %v658
        %804 = vmatprep.subr.bf16.mxu0 0
        %805 = vmatpush2.bf16.msra.mxu0 %v657
        %806 = vmatprep.subr.bf16.mxu0 0
        %807 = vmatpush2.bf16.msra.mxu0 %v656
        %808 = vmatprep.mubr.bf16.mxu0 %v365
        %809 = vmatmul.mubr.bf16.gmra.mxu0 %v357
        %v810 = vpop.f32.mrf.mxu0
        %v811 = vadd.f32 0.0, %v810
        %v812 = vpop.f32.mrf.mxu0
        %v813 = vpop.f32.mrf.mxu0
        %v814 = vpop.f32.mrf.mxu0
        %815 = vdwg.mxu0
        %816 = vmatprep.subr.bf16.mxu0 0
        %817 = vmatpush1.bf16.msra.mxu0 %v671
        %818 = vmatprep.subr.bf16.mxu0 0
        %819 = vmatpush1.bf16.msra.mxu0 %v670
        %820 = vmatprep.subr.bf16.mxu0 0
        %821 = vmatpush1.bf16.msra.mxu0 %v669
        %822 = vmatprep.subr.bf16.mxu0 0
        %823 = vmatpush1.bf16.msra.mxu0 %v668
        %824 = vmatprep.subr.bf16.mxu0 0
        %825 = vmatpush1.bf16.msra.mxu0 %v667
        %826 = vmatprep.subr.bf16.mxu0 0
        %827 = vmatpush1.bf16.msra.mxu0 %v666
        %828 = vmatprep.subr.bf16.mxu0 0
        %829 = vmatpush1.bf16.msra.mxu0 %v665
        %830 = vmatprep.subr.bf16.mxu0 0
        %831 = vmatpush1.bf16.msra.mxu0 %v664
        %832 = vmatprep.subr.bf16.mxu0 0
        %833 = vmatpush2.bf16.msra.mxu0 %v679
        %834 = vmatprep.subr.bf16.mxu0 0
        %835 = vmatpush2.bf16.msra.mxu0 %v678
        %836 = vmatprep.subr.bf16.mxu0 0
        %837 = vmatpush2.bf16.msra.mxu0 %v677
        %838 = vmatprep.subr.bf16.mxu0 0
        %839 = vmatpush2.bf16.msra.mxu0 %v676
        %840 = vmatprep.subr.bf16.mxu0 0
        %841 = vmatpush2.bf16.msra.mxu0 %v675
        %842 = vmatprep.subr.bf16.mxu0 0
        %843 = vmatpush2.bf16.msra.mxu0 %v674
        %844 = vmatprep.subr.bf16.mxu0 0
        %845 = vmatpush2.bf16.msra.mxu0 %v673
        %846 = vmatprep.subr.bf16.mxu0 0
        %847 = vmatpush2.bf16.msra.mxu0 %v672
        %848 = vmatprep.mubr.bf16.mxu0 %v366
        %849 = vmatmul.mubr.bf16.gmra.mxu0 %v364
        %v850 = vpop.f32.mrf.mxu0
        %v851 = vadd.f32 %v811, %v850
        %v852 = vpop.f32.mrf.mxu0
        %v853 = vpop.f32.mrf.mxu0
        %v854 = vpop.f32.mrf.mxu0
        %855 = vdwg.mxu0
        %856 = vmatprep.subr.bf16.mxu0 0
        %857 = vmatpush1.bf16.msra.mxu0 %v687
        %858 = vmatprep.subr.bf16.mxu0 0
        %859 = vmatpush1.bf16.msra.mxu0 %v686
        %860 = vmatprep.subr.bf16.mxu0 0
        %861 = vmatpush1.bf16.msra.mxu0 %v685
        %862 = vmatprep.subr.bf16.mxu0 0
        %863 = vmatpush1.bf16.msra.mxu0 %v684
        %864 = vmatprep.subr.bf16.mxu0 0
        %865 = vmatpush1.bf16.msra.mxu0 %v683
        %866 = vmatprep.subr.bf16.mxu0 0
        %867 = vmatpush1.bf16.msra.mxu0 %v682
        %868 = vmatprep.subr.bf16.mxu0 0
        %869 = vmatpush1.bf16.msra.mxu0 %v681
        %870 = vmatprep.subr.bf16.mxu0 0
        %871 = vmatpush1.bf16.msra.mxu0 %v680
        %872 = vmatprep.subr.bf16.mxu0 0
        %873 = vmatpush2.bf16.msra.mxu0 %v695
        %874 = vmatprep.subr.bf16.mxu0 0
        %875 = vmatpush2.bf16.msra.mxu0 %v694
        %876 = vmatprep.subr.bf16.mxu0 0
        %877 = vmatpush2.bf16.msra.mxu0 %v693
        %878 = vmatprep.subr.bf16.mxu0 0
        %879 = vmatpush2.bf16.msra.mxu0 %v692
        %880 = vmatprep.subr.bf16.mxu0 0
        %881 = vmatpush2.bf16.msra.mxu0 %v691
        %882 = vmatprep.subr.bf16.mxu0 0
        %883 = vmatpush2.bf16.msra.mxu0 %v690
        %884 = vmatprep.subr.bf16.mxu0 0
        %885 = vmatpush2.bf16.msra.mxu0 %v689
        %886 = vmatprep.subr.bf16.mxu0 0
        %887 = vmatpush2.bf16.msra.mxu0 %v688
        %888 = vmatprep.mubr.bf16.mxu0 %v382
        %889 = vmatmul.mubr.bf16.gmra.mxu0 %v374
        %v890 = vpop.f32.mrf.mxu0
        %v891 = vadd.f32 %v851, %v890
        %v892 = vpop.f32.mrf.mxu0
        %v893 = vpop.f32.mrf.mxu0
        %v894 = vpop.f32.mrf.mxu0
        %895 = vdwg.mxu0
        %896 = vmatprep.subr.bf16.mxu0 0
        %897 = vmatpush1.bf16.msra.mxu0 %v703
        %898 = vmatprep.subr.bf16.mxu0 0
        %899 = vmatpush1.bf16.msra.mxu0 %v702
        %900 = vmatprep.subr.bf16.mxu0 0
        %901 = vmatpush1.bf16.msra.mxu0 %v701
        %902 = vmatprep.subr.bf16.mxu0 0
        %903 = vmatpush1.bf16.msra.mxu0 %v700
        %904 = vmatprep.subr.bf16.mxu0 0
        %905 = vmatpush1.bf16.msra.mxu0 %v699
        %906 = vmatprep.subr.bf16.mxu0 0
        %907 = vmatpush1.bf16.msra.mxu0 %v698
        %908 = vmatprep.subr.bf16.mxu0 0
        %909 = vmatpush1.bf16.msra.mxu0 %v697
        %910 = vmatprep.subr.bf16.mxu0 0
        %911 = vmatpush1.bf16.msra.mxu0 %v696
        %912 = vmatprep.subr.bf16.mxu0 0
        %913 = vmatpush2.bf16.msra.mxu0 %v711
        %914 = vmatprep.subr.bf16.mxu0 0
        %915 = vmatpush2.bf16.msra.mxu0 %v710
        %916 = vmatprep.subr.bf16.mxu0 0
        %917 = vmatpush2.bf16.msra.mxu0 %v709
        %918 = vmatprep.subr.bf16.mxu0 0
        %919 = vmatpush2.bf16.msra.mxu0 %v708
        %920 = vmatprep.subr.bf16.mxu0 0
        %921 = vmatpush2.bf16.msra.mxu0 %v707
        %922 = vmatprep.subr.bf16.mxu0 0
        %923 = vmatpush2.bf16.msra.mxu0 %v706
        %924 = vmatprep.subr.bf16.mxu0 0
        %925 = vmatpush2.bf16.msra.mxu0 %v705
        %926 = vmatprep.subr.bf16.mxu0 0
        %927 = vmatpush2.bf16.msra.mxu0 %v704
        %928 = vmatprep.mubr.bf16.mxu0 %v383
        %929 = vmatmul.mubr.bf16.gmra.mxu0 %v381
        %v930 = vpop.f32.mrf.mxu0
        %v931 = vadd.f32 %v891, %v930
        %v932 = vpop.f32.mrf.mxu0
        %v933 = vpop.f32.mrf.mxu0
        %v934 = vpop.f32.mrf.mxu0
        %935 = vdwg.mxu0
        %v936 = vadd.f32 %v217, %v931
        %vm937 = vcmask 257024
        %938 = vst.msk [vmem:[#allocation2] sm:$0xf] %vm937, %v936
        %p939 = scmp.eq.s32.totalorder %s16, 1
        // Predicated region
        $region41: #{pairwise_headpose_facial_dynamics_loss.3} parent=35 // pred_check
          %p940 = pneg %p939
        $region42: #{pairwise_headpose_facial_dynamics_loss.3} parent=35 // pred_check_branch
          %942 = sbr.rel (%p940) target = $region44
        $region43: #{pairwise_headpose_facial_dynamics_loss.3} parent=35 // pred_region
          %v943 = vld [vmem:[#allocation2] sm:$0xf]
          %v945 = vrot.slane %v943, 2
          %v947 = vsub.f32 %v943, %v945
          %v948 = vand.u32 2147483647, %v947
          %v949 = vld [vmem:[%s2] sm:$0x3]
          %v950 = vld [vmem:[%s3] sm:$0x3]
          %v951 = vsub.f32 %v949, %v950
          %v952 = vand.u32 2147483647, %v951
          %vm953 = vcmask 254976
          %v954 = vsel %vm953, %v948, 0.0
          %v955 = vrot.slane %v954, 4
          %v956 = vadd.f32 %v954, %v955
          %v957 = vrot.slane %v956, 2
          %v958 = vadd.f32 %v956, %v957
          %v959 = vrot.slane %v958, 1
          %v960 = vadd.f32 %v958, %v959
          %vm961 = vcmask 58368
          %v962 = vsel %vm961, %v952, 0.0
          %v963 = vrot.slane %v962, 4
          %v964 = vadd.f32 %v962, %v963
          %v965 = vrot.slane %v964, 2
          %v966 = vadd.f32 %v964, %v965
          %v967 = vrot.slane %v966, 1
          %v968 = vadd.f32 %v966, %v967
          %vm969 = vcmask 253952
          %v970 = vsel %vm969, %v960, 0.0
          %971 = vadd.xlane.f32.xlu0 %v970
          %v972 = vpop.xlane.xlu0 %971
          %v973 = vrot.slane %v972, 4
          %v974 = vadd.f32 %v972, %v973
          %v975 = vrot.slane %v974, 2
          %v976 = vadd.f32 %v974, %v975
          %v977 = vrot.slane %v976, 1
          %v978 = vadd.f32 %v976, %v977
          %s979 = vtos %v978
          %vm980 = vcmask 57344
          %v981 = vsel %vm980, %v968, 0.0
          %982 = vadd.xlane.f32.xlu0 %v981
          %v983 = vpop.xlane.xlu0 %982
          %v984 = vrot.slane %v983, 4
          %v985 = vadd.f32 %v983, %v984
          %v986 = vrot.slane %v985, 2
          %v987 = vadd.f32 %v985, %v986
          %v988 = vrot.slane %v987, 1
          %v989 = vadd.f32 %v987, %v988
          %s990 = vtos %v989
          %s991 = sadd.f32 %s979, %s990
          %s992 = smul.f32 %s991, 0.008928572
          %s993 = scalar_lea.smem [#allocation3], 0
          %994 = sst [smem:[%s993]] %s992
        $region44: #{pairwise_headpose_facial_dynamics_loss.3} parent=35 // pred_fallthru
          _
        // Predicated region
        $region45: #{pairwise_headpose_facial_dynamics_loss.3} parent=35 // pred_check
          %p995 = pneg %p123
        $region46: #{pairwise_headpose_facial_dynamics_loss.3} parent=35 // pred_check_branch
          %997 = sbr.rel (%p995) target = $region48
        $region47: #{pairwise_headpose_facial_dynamics_loss.3} parent=35 // pred_region
          %s999 = ssub.s32 16, 16
          %1000 = vsyncadd [#allocation4], %s999
          %1003 = dma.smem_to_hbm [#allocation3], 16, %s4, [#allocation4]
        $region48: #{pairwise_headpose_facial_dynamics_loss.3} parent=35 // pred_fallthru
          _
        // Predicated region
        $region49: #{pairwise_headpose_facial_dynamics_loss.3} parent=35 // pred_check
          %p1004 = pneg %p123
        $region50: #{pairwise_headpose_facial_dynamics_loss.3} parent=35 // pred_check_branch
          %1006 = sbr.rel (%p1004) target = $region52
        $region51: #{pairwise_headpose_facial_dynamics_loss.3} parent=35 // pred_region
          %1007 = dma.done [#allocation4], 16
        $region52: #{pairwise_headpose_facial_dynamics_loss.3} parent=35 // pred_fallthru
          _
        %1008 = sfence
      $region36: #{pairwise_headpose_facial_dynamics_loss.3} parent=5 // pred_fallthru
        _
      %p1009 = scmp.le.s32.totalorder 2, %s11
      // Predicated region
      $region53: #{pairwise_headpose_facial_dynamics_loss.3} parent=5 // pred_check
        %p1010 = pneg %p1009
      $region54: #{pairwise_headpose_facial_dynamics_loss.3} parent=5 // pred_check_branch
        %1012 = sbr.rel (%p1010) target = $region56
      $region55: #{pairwise_headpose_facial_dynamics_loss.3} parent=5 // pred_region
        %s1013 = ssub.s32 %s11, 2
      $region56: #{pairwise_headpose_facial_dynamics_loss.3} parent=5 // pred_fallthru
        _
    $region6: #{pairwise_headpose_facial_dynamics_loss.3} parent=1 // loop_footer
      %s15 = sadd.s32 1, %s11
    $region7: #{pairwise_headpose_facial_dynamics_loss.3} parent=1 // loop_footer_branch
      %10 = sbr.rel target = $region3
    $region8: #{pairwise_headpose_facial_dynamics_loss.3} parent=1 // loop_exit
      _
    %1014 = vsyncpa [#allocation4], 1
    %s1015 = scalar_lea.sflag [#allocation4], 1
    %1016 = vsyncpa %s1015, 1

</llo_original>
